<compile_context>
chip_gen: v7x
topology: tpu7x:2x2x1
jax: 0.10.0
libtpu: 0.0.40
codegen_flags: <defaults>
</compile_context>

<pallas_src>
import math
import numpy as np
import jax
import jax.numpy as jnp
from jax.experimental import pallas as pl
from jax.experimental.pallas import tpu as pltpu

IN_FEATURES = 32
OUT_FEATURES = 16
GRID_SIZE = 5
SPLINE_ORDER = 3
K = GRID_SIZE + SPLINE_ORDER            # spline bases per input feature (8)
G = GRID_SIZE + 2 * SPLINE_ORDER + 1    # grid points per input feature (12)
GRID_RANGE = (-1.0, 1.0)
PACK = 4                                # batch samples packed per 128-lane row
D = PACK * IN_FEATURES                  # packed lane width (128)


def kan_linear_kernel(x_ref, grid_ref, recip_ref, fused_wt_ref, out_ref):
    x = x_ref[...]                      # (TB, 128): 4 samples lane-packed
    grid = grid_ref[...]                # (G, 128): knots tiled over the 4 packs
    recip = recip_ref[...]              # (3G, 128): 1/(g[j+k]-g[j]) tables

    def knot(j):                        # (1, 128) sublane row, no cross-lane moves
        return grid[j:j + 1, :]

    def rrow(k, j):                     # (1, 128): 1 / (grid[j+k] - grid[j])
        r = (k - 1) * G + j
        return recip[r:r + 1, :]

    # Hoist x - grid[j] once per knot (reused by every recursion level).
    dx = [x - knot(j) for j in range(G)]

    # Degree-0 indicators: bases[j] = (x >= g_j) & ~(x >= g_{j+1}).
    cmp = [x >= knot(j) for j in range(G)]
    bases = [(cmp[j] & (~cmp[j + 1])).astype(x.dtype) for j in range(G - 1)]

    # Cox-de Boor recursion, strength-reduced:
    #   t[j]   = bases[j] / (g[j+k] - g[j])
    #   new[j] = dx[j] * t[j] - dx[j+k+1] * t[j+1]
    for k in range(1, SPLINE_ORDER + 1):
        t = [rrow(k, j) * bases[j] for j in range(len(bases))]
        bases = [dx[j] * t[j] - dx[j + k + 1] * t[j + 1]
                 for j in range(len(bases) - 1)]
    # len(bases) == K, each (TB, 128)

    # Base activation joins the same contraction.
    silu = x * jax.nn.sigmoid(x)

    # Single fused MXU contraction: (TB, (K+1)*128) x ((K+1)*128, 4*OUT).
    slab = jnp.concatenate(bases + [silu], axis=-1)
    out_ref[...] = jnp.dot(slab, fused_wt_ref[...],
                           preferred_element_type=jnp.float32)


def kan_linear(x, grid, base_weight, spline_weight, spline_scaler, *, tile_b=2048):
    """x: (B, IN_FEATURES) -> (B, OUT_FEATURES). 1-D batch grid, params fused at trace time."""
    B = x.shape[0]

    # ---- batch tiling over lane-packed rows --------------------------------
    rows = -(-B // PACK)                       # packed rows needed
    tbp_req = max(1, tile_b // PACK)           # requested packed rows per tile
    if rows <= 8:
        tbp = rows                             # single tile == full array (ok w/ (8,128) rule)
    else:
        # At least 2 tiles so the "parallel" axis shards across v7x's 2 cores.
        half = max(8, ((-(-rows // 2) + 7) // 8) * 8)
        tbp = max(8, (min(tbp_req, half) // 8) * 8)
    n_tiles = -(-rows // tbp)
    rows_p = n_tiles * tbp
    Bp = rows_p * PACK

    xp = x if Bp == B else jnp.pad(x, ((0, Bp - B), (0, 0)))
    xp = xp.reshape(rows_p, D)                 # lane-pack 4 samples per row

    # ---- trace-time parameter / table prep (not in-kernel) -----------------
    grid_t = jnp.transpose(grid, (1, 0))                        # (G, IN)
    recs = []
    for k in range(1, SPLINE_ORDER + 1):
        r = 1.0 / (grid_t[k:, :] - grid_t[:-k, :])              # (G-k, IN)
        recs.append(jnp.pad(r, ((0, k), (0, 0))))               # padded rows never read
    recip = jnp.concatenate(recs, axis=0)                       # (3G, IN)
    grid_p = jnp.tile(grid_t, (1, PACK))                        # (G, 128)
    recip_p = jnp.tile(recip, (1, PACK))                        # (3G, 128)

    # Fused weight, block-diagonal over the PACK lane groups:
    #   rows 0..K*128-1 : scaled spline weight, row = k*128 + p*IN + i
    #   rows K*128..    : base weight,          row = K*128 + p*IN + i
    #   col = p*OUT + o  (nonzero only when the row's pack p matches the col's)
    eye = jnp.eye(PACK, dtype=jnp.float32)
    scaled = spline_weight * spline_scaler[:, :, None]           # (OUT, IN, K)
    w_spl = jnp.transpose(scaled, (2, 1, 0))                     # (K, IN, OUT)
    w_spl = jnp.einsum('kio,pq->kpiqo', w_spl, eye)
    w_spl = w_spl.reshape(K * D, PACK * OUT_FEATURES)
    base_t = jnp.transpose(base_weight, (1, 0))                  # (IN, OUT)
    w_base = jnp.einsum('io,pq->piqo', base_t, eye)
    w_base = w_base.reshape(D, PACK * OUT_FEATURES)
    fused_wt = jnp.concatenate([w_spl, w_base], axis=0)          # ((K+1)*128, 4*OUT)

    out = pl.pallas_call(
        kan_linear_kernel,
        out_shape=jax.ShapeDtypeStruct((rows_p, PACK * OUT_FEATURES), jnp.float32),
        grid_spec=pltpu.PrefetchScalarGridSpec(
            num_scalar_prefetch=0,
            grid=(n_tiles,),
            in_specs=[
                pl.BlockSpec((tbp, D), lambda i: (i, 0)),
                pl.BlockSpec((G, D), lambda i: (0, 0)),
                pl.BlockSpec((SPLINE_ORDER * G, D), lambda i: (0, 0)),
                pl.BlockSpec(((K + 1) * D, PACK * OUT_FEATURES), lambda i: (0, 0)),
            ],
            out_specs=pl.BlockSpec((tbp, PACK * OUT_FEATURES), lambda i: (i, 0)),
        ),
        compiler_params=pltpu.CompilerParams(
            dimension_semantics=("parallel",),
            vmem_limit_bytes=64 * 1024 * 1024,   # headroom for large tiles on v5e
        ),
    )(xp, grid_p, recip_p, fused_wt)

    # Unpack lanes: (rows_p, 4*OUT) -> (rows_p*4, OUT), drop padded samples.
    return out.reshape(Bp, OUT_FEATURES)[:B]


def kan_linear_ref(x, grid, base_weight, spline_weight, spline_scaler):
    """Pure-JAX reference mirroring the PyTorch forward exactly."""
    base_out = (x * jax.nn.sigmoid(x)) @ base_weight.T
    xg = x[:, :, None]
    g = grid[None, :, :]
    bases = ((xg >= g[:, :, :-1]) & (xg < g[:, :, 1:])).astype(x.dtype)
    for k in range(1, SPLINE_ORDER + 1):
        bases = ((xg - g[:, :, :-(k + 1)])
                 / (g[:, :, k:-1] - g[:, :, :-(k + 1)]) * bases[:, :, :-1]
                 + (g[:, :, k + 1:] - xg)
                 / (g[:, :, k + 1:] - g[:, :, 1:-k]) * bases[:, :, 1:])
    scaled = spline_weight * spline_scaler[:, :, None]
    spline_out = bases.reshape(x.shape[0], -1) @ scaled.reshape(OUT_FEATURES, -1).T
    return base_out + spline_out


if __name__ == "__main__":
    key = jax.random.PRNGKey(0)
    kx, kb, ks, kc = jax.random.split(key, 4)

    B = 8
    x = jax.random.normal(kx, (B, IN_FEATURES), dtype=jnp.float32)

    # grid buffer: (in_features, grid_size + 2*spline_order + 1)
    h = (GRID_RANGE[1] - GRID_RANGE[0]) / GRID_SIZE
    grid_1d = (jnp.arange(-SPLINE_ORDER, GRID_SIZE + SPLINE_ORDER + 1,
                          dtype=jnp.float32) * h + GRID_RANGE[0])
    grid = jnp.broadcast_to(grid_1d, (IN_FEATURES, G)).astype(jnp.float32)

    # Deterministic parameter init (kaiming_uniform-style bounds; synthetic).
    # TODO(synk): reset_parameters() also runs a lstsq-based curve2coeff init;
    # it only changes initial values, not forward semantics, so uniform init is used.
    bound_base = math.sqrt(1.0 / IN_FEATURES)   # kaiming_uniform with a=sqrt(5)
    base_weight = jax.random.uniform(
        kb, (OUT_FEATURES, IN_FEATURES), jnp.float32, -bound_base, bound_base)
    spline_weight = 0.1 * jax.random.uniform(
        ks, (OUT_FEATURES, IN_FEATURES, K), jnp.float32, -1.0, 1.0)
    spline_scaler = jax.random.uniform(
        kc, (OUT_FEATURES, IN_FEATURES), jnp.float32, -bound_base, bound_base)

    out = kan_linear(x, grid, base_weight, spline_weight, spline_scaler)
    out = jax.block_until_ready(out)

    # Reference at full f32 matmul precision; small headroom over 1e-5 for the
    # reciprocal-vs-divide and reassociated recursion in the kernel.
    with jax.default_matmul_precision("float32"):
        ref = kan_linear_ref(x, grid, base_weight, spline_weight, spline_scaler)
    ref = jax.block_until_ready(ref)

    np.testing.assert_allclose(np.asarray(out), np.asarray(ref),
                               rtol=1e-4, atol=1e-4)
    print("KERNEL_OK")
</pallas_src>

<mosaic_0001>
module attributes {stable_mosaic.version = 11 : i64} {
  func.func @kan_linear_kernel(%arg0: i32, %arg1: memref<2x128xf32, #tpu.memory_space<vmem>>, %arg2: memref<12x128xf32, #tpu.memory_space<vmem>>, %arg3: memref<36x128xf32, #tpu.memory_space<vmem>>, %arg4: memref<1152x64xf32, #tpu.memory_space<vmem>>, %arg5: memref<2x64xf32, #tpu.memory_space<vmem>>) attributes {dimension_semantics = [#tpu.dimension_semantics<parallel>], iteration_bounds = array<i64: 1>, scalar_prefetch = 0 : i64, scratch_operands = 0 : i64, tpu.core_type = #tpu.core_type<tc>, window_params = [{transform_indices = @transform_0, window_bounds = array<i64: 2, 128>}, {pipeline_mode = #tpu.pipeline_mode<synchronous>, transform_indices = @transform_1, window_bounds = array<i64: 12, 128>}, {pipeline_mode = #tpu.pipeline_mode<synchronous>, transform_indices = @transform_2, window_bounds = array<i64: 36, 128>}, {pipeline_mode = #tpu.pipeline_mode<synchronous>, transform_indices = @transform_3, window_bounds = array<i64: 1152, 64>}, {transform_indices = @transform_4, window_bounds = array<i64: 2, 64>}]} {
    %c0 = arith.constant 0 : index
    %c0_0 = arith.constant 0 : index
    %0 = vector.load %arg1[%c0, %c0_0] : memref<2x128xf32, #tpu.memory_space<vmem>>, vector<2x128xf32>
    %c0_1 = arith.constant 0 : index
    %c0_2 = arith.constant 0 : index
    %1 = vector.load %arg2[%c0_1, %c0_2] : memref<12x128xf32, #tpu.memory_space<vmem>>, vector<12x128xf32>
    %c0_3 = arith.constant 0 : index
    %c0_4 = arith.constant 0 : index
    %2 = vector.load %arg3[%c0_3, %c0_4] : memref<36x128xf32, #tpu.memory_space<vmem>>, vector<36x128xf32>
    %3 = vector.extract_strided_slice %1 {offsets = [0, 0], sizes = [1, 128], strides = [1, 1]} : vector<12x128xf32> to vector<1x128xf32>
    %4 = vector.broadcast %3 : vector<1x128xf32> to vector<2x128xf32>
    %5 = arith.subf %0, %4 : vector<2x128xf32>
    %6 = vector.extract_strided_slice %1 {offsets = [1, 0], sizes = [1, 128], strides = [1, 1]} : vector<12x128xf32> to vector<1x128xf32>
    %7 = vector.broadcast %6 : vector<1x128xf32> to vector<2x128xf32>
    %8 = arith.subf %0, %7 : vector<2x128xf32>
    %9 = vector.extract_strided_slice %1 {offsets = [2, 0], sizes = [1, 128], strides = [1, 1]} : vector<12x128xf32> to vector<1x128xf32>
    %10 = vector.broadcast %9 : vector<1x128xf32> to vector<2x128xf32>
    %11 = arith.subf %0, %10 : vector<2x128xf32>
    %12 = vector.extract_strided_slice %1 {offsets = [3, 0], sizes = [1, 128], strides = [1, 1]} : vector<12x128xf32> to vector<1x128xf32>
    %13 = vector.broadcast %12 : vector<1x128xf32> to vector<2x128xf32>
    %14 = arith.subf %0, %13 : vector<2x128xf32>
    %15 = vector.extract_strided_slice %1 {offsets = [4, 0], sizes = [1, 128], strides = [1, 1]} : vector<12x128xf32> to vector<1x128xf32>
    %16 = vector.broadcast %15 : vector<1x128xf32> to vector<2x128xf32>
    %17 = arith.subf %0, %16 : vector<2x128xf32>
    %18 = vector.extract_strided_slice %1 {offsets = [5, 0], sizes = [1, 128], strides = [1, 1]} : vector<12x128xf32> to vector<1x128xf32>
    %19 = vector.broadcast %18 : vector<1x128xf32> to vector<2x128xf32>
    %20 = arith.subf %0, %19 : vector<2x128xf32>
    %21 = vector.extract_strided_slice %1 {offsets = [6, 0], sizes = [1, 128], strides = [1, 1]} : vector<12x128xf32> to vector<1x128xf32>
    %22 = vector.broadcast %21 : vector<1x128xf32> to vector<2x128xf32>
    %23 = arith.subf %0, %22 : vector<2x128xf32>
    %24 = vector.extract_strided_slice %1 {offsets = [7, 0], sizes = [1, 128], strides = [1, 1]} : vector<12x128xf32> to vector<1x128xf32>
    %25 = vector.broadcast %24 : vector<1x128xf32> to vector<2x128xf32>
    %26 = arith.subf %0, %25 : vector<2x128xf32>
    %27 = vector.extract_strided_slice %1 {offsets = [8, 0], sizes = [1, 128], strides = [1, 1]} : vector<12x128xf32> to vector<1x128xf32>
    %28 = vector.broadcast %27 : vector<1x128xf32> to vector<2x128xf32>
    %29 = arith.subf %0, %28 : vector<2x128xf32>
    %30 = vector.extract_strided_slice %1 {offsets = [9, 0], sizes = [1, 128], strides = [1, 1]} : vector<12x128xf32> to vector<1x128xf32>
    %31 = vector.broadcast %30 : vector<1x128xf32> to vector<2x128xf32>
    %32 = arith.subf %0, %31 : vector<2x128xf32>
    %33 = vector.extract_strided_slice %1 {offsets = [10, 0], sizes = [1, 128], strides = [1, 1]} : vector<12x128xf32> to vector<1x128xf32>
    %34 = vector.broadcast %33 : vector<1x128xf32> to vector<2x128xf32>
    %35 = arith.subf %0, %34 : vector<2x128xf32>
    %36 = vector.extract_strided_slice %1 {offsets = [11, 0], sizes = [1, 128], strides = [1, 1]} : vector<12x128xf32> to vector<1x128xf32>
    %37 = vector.broadcast %36 : vector<1x128xf32> to vector<2x128xf32>
    %38 = arith.subf %0, %37 : vector<2x128xf32>
    %39 = vector.extract_strided_slice %1 {offsets = [0, 0], sizes = [1, 128], strides = [1, 1]} : vector<12x128xf32> to vector<1x128xf32>
    %40 = vector.broadcast %39 : vector<1x128xf32> to vector<2x128xf32>
    %41 = arith.cmpf oge, %0, %40 : vector<2x128xf32>
    %42 = vector.extract_strided_slice %1 {offsets = [1, 0], sizes = [1, 128], strides = [1, 1]} : vector<12x128xf32> to vector<1x128xf32>
    %43 = vector.broadcast %42 : vector<1x128xf32> to vector<2x128xf32>
    %44 = arith.cmpf oge, %0, %43 : vector<2x128xf32>
    %45 = vector.extract_strided_slice %1 {offsets = [2, 0], sizes = [1, 128], strides = [1, 1]} : vector<12x128xf32> to vector<1x128xf32>
    %46 = vector.broadcast %45 : vector<1x128xf32> to vector<2x128xf32>
    %47 = arith.cmpf oge, %0, %46 : vector<2x128xf32>
    %48 = vector.extract_strided_slice %1 {offsets = [3, 0], sizes = [1, 128], strides = [1, 1]} : vector<12x128xf32> to vector<1x128xf32>
    %49 = vector.broadcast %48 : vector<1x128xf32> to vector<2x128xf32>
    %50 = arith.cmpf oge, %0, %49 : vector<2x128xf32>
    %51 = vector.extract_strided_slice %1 {offsets = [4, 0], sizes = [1, 128], strides = [1, 1]} : vector<12x128xf32> to vector<1x128xf32>
    %52 = vector.broadcast %51 : vector<1x128xf32> to vector<2x128xf32>
    %53 = arith.cmpf oge, %0, %52 : vector<2x128xf32>
    %54 = vector.extract_strided_slice %1 {offsets = [5, 0], sizes = [1, 128], strides = [1, 1]} : vector<12x128xf32> to vector<1x128xf32>
    %55 = vector.broadcast %54 : vector<1x128xf32> to vector<2x128xf32>
    %56 = arith.cmpf oge, %0, %55 : vector<2x128xf32>
    %57 = vector.extract_strided_slice %1 {offsets = [6, 0], sizes = [1, 128], strides = [1, 1]} : vector<12x128xf32> to vector<1x128xf32>
    %58 = vector.broadcast %57 : vector<1x128xf32> to vector<2x128xf32>
    %59 = arith.cmpf oge, %0, %58 : vector<2x128xf32>
    %60 = vector.extract_strided_slice %1 {offsets = [7, 0], sizes = [1, 128], strides = [1, 1]} : vector<12x128xf32> to vector<1x128xf32>
    %61 = vector.broadcast %60 : vector<1x128xf32> to vector<2x128xf32>
    %62 = arith.cmpf oge, %0, %61 : vector<2x128xf32>
    %63 = vector.extract_strided_slice %1 {offsets = [8, 0], sizes = [1, 128], strides = [1, 1]} : vector<12x128xf32> to vector<1x128xf32>
    %64 = vector.broadcast %63 : vector<1x128xf32> to vector<2x128xf32>
    %65 = arith.cmpf oge, %0, %64 : vector<2x128xf32>
    %66 = vector.extract_strided_slice %1 {offsets = [9, 0], sizes = [1, 128], strides = [1, 1]} : vector<12x128xf32> to vector<1x128xf32>
    %67 = vector.broadcast %66 : vector<1x128xf32> to vector<2x128xf32>
    %68 = arith.cmpf oge, %0, %67 : vector<2x128xf32>
    %69 = vector.extract_strided_slice %1 {offsets = [10, 0], sizes = [1, 128], strides = [1, 1]} : vector<12x128xf32> to vector<1x128xf32>
    %70 = vector.broadcast %69 : vector<1x128xf32> to vector<2x128xf32>
    %71 = arith.cmpf oge, %0, %70 : vector<2x128xf32>
    %72 = vector.extract_strided_slice %1 {offsets = [11, 0], sizes = [1, 128], strides = [1, 1]} : vector<12x128xf32> to vector<1x128xf32>
    %73 = vector.broadcast %72 : vector<1x128xf32> to vector<2x128xf32>
    %74 = arith.cmpf oge, %0, %73 : vector<2x128xf32>
    %cst = arith.constant dense<true> : vector<2x128xi1>
    %75 = arith.xori %44, %cst : vector<2x128xi1>
    %76 = arith.andi %41, %75 : vector<2x128xi1>
    %77 = arith.extui %76 : vector<2x128xi1> to vector<2x128xi32>
    %78 = arith.sitofp %77 : vector<2x128xi32> to vector<2x128xf32>
    %cst_5 = arith.constant dense<true> : vector<2x128xi1>
    %79 = arith.xori %47, %cst_5 : vector<2x128xi1>
    %80 = arith.andi %44, %79 : vector<2x128xi1>
    %81 = arith.extui %80 : vector<2x128xi1> to vector<2x128xi32>
    %82 = arith.sitofp %81 : vector<2x128xi32> to vector<2x128xf32>
    %cst_6 = arith.constant dense<true> : vector<2x128xi1>
    %83 = arith.xori %50, %cst_6 : vector<2x128xi1>
    %84 = arith.andi %47, %83 : vector<2x128xi1>
    %85 = arith.extui %84 : vector<2x128xi1> to vector<2x128xi32>
    %86 = arith.sitofp %85 : vector<2x128xi32> to vector<2x128xf32>
    %cst_7 = arith.constant dense<true> : vector<2x128xi1>
    %87 = arith.xori %53, %cst_7 : vector<2x128xi1>
    %88 = arith.andi %50, %87 : vector<2x128xi1>
    %89 = arith.extui %88 : vector<2x128xi1> to vector<2x128xi32>
    %90 = arith.sitofp %89 : vector<2x128xi32> to vector<2x128xf32>
    %cst_8 = arith.constant dense<true> : vector<2x128xi1>
    %91 = arith.xori %56, %cst_8 : vector<2x128xi1>
    %92 = arith.andi %53, %91 : vector<2x128xi1>
    %93 = arith.extui %92 : vector<2x128xi1> to vector<2x128xi32>
    %94 = arith.sitofp %93 : vector<2x128xi32> to vector<2x128xf32>
    %cst_9 = arith.constant dense<true> : vector<2x128xi1>
    %95 = arith.xori %59, %cst_9 : vector<2x128xi1>
    %96 = arith.andi %56, %95 : vector<2x128xi1>
    %97 = arith.extui %96 : vector<2x128xi1> to vector<2x128xi32>
    %98 = arith.sitofp %97 : vector<2x128xi32> to vector<2x128xf32>
    %cst_10 = arith.constant dense<true> : vector<2x128xi1>
    %99 = arith.xori %62, %cst_10 : vector<2x128xi1>
    %100 = arith.andi %59, %99 : vector<2x128xi1>
    %101 = arith.extui %100 : vector<2x128xi1> to vector<2x128xi32>
    %102 = arith.sitofp %101 : vector<2x128xi32> to vector<2x128xf32>
    %cst_11 = arith.constant dense<true> : vector<2x128xi1>
    %103 = arith.xori %65, %cst_11 : vector<2x128xi1>
    %104 = arith.andi %62, %103 : vector<2x128xi1>
    %105 = arith.extui %104 : vector<2x128xi1> to vector<2x128xi32>
    %106 = arith.sitofp %105 : vector<2x128xi32> to vector<2x128xf32>
    %cst_12 = arith.constant dense<true> : vector<2x128xi1>
    %107 = arith.xori %68, %cst_12 : vector<2x128xi1>
    %108 = arith.andi %65, %107 : vector<2x128xi1>
    %109 = arith.extui %108 : vector<2x128xi1> to vector<2x128xi32>
    %110 = arith.sitofp %109 : vector<2x128xi32> to vector<2x128xf32>
    %cst_13 = arith.constant dense<true> : vector<2x128xi1>
    %111 = arith.xori %71, %cst_13 : vector<2x128xi1>
    %112 = arith.andi %68, %111 : vector<2x128xi1>
    %113 = arith.extui %112 : vector<2x128xi1> to vector<2x128xi32>
    %114 = arith.sitofp %113 : vector<2x128xi32> to vector<2x128xf32>
    %cst_14 = arith.constant dense<true> : vector<2x128xi1>
    %115 = arith.xori %74, %cst_14 : vector<2x128xi1>
    %116 = arith.andi %71, %115 : vector<2x128xi1>
    %117 = arith.extui %116 : vector<2x128xi1> to vector<2x128xi32>
    %118 = arith.sitofp %117 : vector<2x128xi32> to vector<2x128xf32>
    %119 = vector.extract_strided_slice %2 {offsets = [0, 0], sizes = [1, 128], strides = [1, 1]} : vector<36x128xf32> to vector<1x128xf32>
    %120 = vector.broadcast %119 : vector<1x128xf32> to vector<2x128xf32>
    %121 = arith.mulf %120, %78 : vector<2x128xf32>
    %122 = vector.extract_strided_slice %2 {offsets = [1, 0], sizes = [1, 128], strides = [1, 1]} : vector<36x128xf32> to vector<1x128xf32>
    %123 = vector.broadcast %122 : vector<1x128xf32> to vector<2x128xf32>
    %124 = arith.mulf %123, %82 : vector<2x128xf32>
    %125 = vector.extract_strided_slice %2 {offsets = [2, 0], sizes = [1, 128], strides = [1, 1]} : vector<36x128xf32> to vector<1x128xf32>
    %126 = vector.broadcast %125 : vector<1x128xf32> to vector<2x128xf32>
    %127 = arith.mulf %126, %86 : vector<2x128xf32>
    %128 = vector.extract_strided_slice %2 {offsets = [3, 0], sizes = [1, 128], strides = [1, 1]} : vector<36x128xf32> to vector<1x128xf32>
    %129 = vector.broadcast %128 : vector<1x128xf32> to vector<2x128xf32>
    %130 = arith.mulf %129, %90 : vector<2x128xf32>
    %131 = vector.extract_strided_slice %2 {offsets = [4, 0], sizes = [1, 128], strides = [1, 1]} : vector<36x128xf32> to vector<1x128xf32>
    %132 = vector.broadcast %131 : vector<1x128xf32> to vector<2x128xf32>
    %133 = arith.mulf %132, %94 : vector<2x128xf32>
    %134 = vector.extract_strided_slice %2 {offsets = [5, 0], sizes = [1, 128], strides = [1, 1]} : vector<36x128xf32> to vector<1x128xf32>
    %135 = vector.broadcast %134 : vector<1x128xf32> to vector<2x128xf32>
    %136 = arith.mulf %135, %98 : vector<2x128xf32>
    %137 = vector.extract_strided_slice %2 {offsets = [6, 0], sizes = [1, 128], strides = [1, 1]} : vector<36x128xf32> to vector<1x128xf32>
    %138 = vector.broadcast %137 : vector<1x128xf32> to vector<2x128xf32>
    %139 = arith.mulf %138, %102 : vector<2x128xf32>
    %140 = vector.extract_strided_slice %2 {offsets = [7, 0], sizes = [1, 128], strides = [1, 1]} : vector<36x128xf32> to vector<1x128xf32>
    %141 = vector.broadcast %140 : vector<1x128xf32> to vector<2x128xf32>
    %142 = arith.mulf %141, %106 : vector<2x128xf32>
    %143 = vector.extract_strided_slice %2 {offsets = [8, 0], sizes = [1, 128], strides = [1, 1]} : vector<36x128xf32> to vector<1x128xf32>
    %144 = vector.broadcast %143 : vector<1x128xf32> to vector<2x128xf32>
    %145 = arith.mulf %144, %110 : vector<2x128xf32>
    %146 = vector.extract_strided_slice %2 {offsets = [9, 0], sizes = [1, 128], strides = [1, 1]} : vector<36x128xf32> to vector<1x128xf32>
    %147 = vector.broadcast %146 : vector<1x128xf32> to vector<2x128xf32>
    %148 = arith.mulf %147, %114 : vector<2x128xf32>
    %149 = vector.extract_strided_slice %2 {offsets = [10, 0], sizes = [1, 128], strides = [1, 1]} : vector<36x128xf32> to vector<1x128xf32>
    %150 = vector.broadcast %149 : vector<1x128xf32> to vector<2x128xf32>
    %151 = arith.mulf %150, %118 : vector<2x128xf32>
    %152 = arith.mulf %5, %121 : vector<2x128xf32>
    %153 = arith.mulf %11, %124 : vector<2x128xf32>
    %154 = arith.subf %152, %153 : vector<2x128xf32>
    %155 = arith.mulf %8, %124 : vector<2x128xf32>
    %156 = arith.mulf %14, %127 : vector<2x128xf32>
    %157 = arith.subf %155, %156 : vector<2x128xf32>
    %158 = arith.mulf %11, %127 : vector<2x128xf32>
    %159 = arith.mulf %17, %130 : vector<2x128xf32>
    %160 = arith.subf %158, %159 : vector<2x128xf32>
    %161 = arith.mulf %14, %130 : vector<2x128xf32>
    %162 = arith.mulf %20, %133 : vector<2x128xf32>
    %163 = arith.subf %161, %162 : vector<2x128xf32>
    %164 = arith.mulf %17, %133 : vector<2x128xf32>
    %165 = arith.mulf %23, %136 : vector<2x128xf32>
    %166 = arith.subf %164, %165 : vector<2x128xf32>
    %167 = arith.mulf %20, %136 : vector<2x128xf32>
    %168 = arith.mulf %26, %139 : vector<2x128xf32>
    %169 = arith.subf %167, %168 : vector<2x128xf32>
    %170 = arith.mulf %23, %139 : vector<2x128xf32>
    %171 = arith.mulf %29, %142 : vector<2x128xf32>
    %172 = arith.subf %170, %171 : vector<2x128xf32>
    %173 = arith.mulf %26, %142 : vector<2x128xf32>
    %174 = arith.mulf %32, %145 : vector<2x128xf32>
    %175 = arith.subf %173, %174 : vector<2x128xf32>
    %176 = arith.mulf %29, %145 : vector<2x128xf32>
    %177 = arith.mulf %35, %148 : vector<2x128xf32>
    %178 = arith.subf %176, %177 : vector<2x128xf32>
    %179 = arith.mulf %32, %148 : vector<2x128xf32>
    %180 = arith.mulf %38, %151 : vector<2x128xf32>
    %181 = arith.subf %179, %180 : vector<2x128xf32>
    %182 = vector.extract_strided_slice %2 {offsets = [12, 0], sizes = [1, 128], strides = [1, 1]} : vector<36x128xf32> to vector<1x128xf32>
    %183 = vector.broadcast %182 : vector<1x128xf32> to vector<2x128xf32>
    %184 = arith.mulf %183, %154 : vector<2x128xf32>
    %185 = vector.extract_strided_slice %2 {offsets = [13, 0], sizes = [1, 128], strides = [1, 1]} : vector<36x128xf32> to vector<1x128xf32>
    %186 = vector.broadcast %185 : vector<1x128xf32> to vector<2x128xf32>
    %187 = arith.mulf %186, %157 : vector<2x128xf32>
    %188 = vector.extract_strided_slice %2 {offsets = [14, 0], sizes = [1, 128], strides = [1, 1]} : vector<36x128xf32> to vector<1x128xf32>
    %189 = vector.broadcast %188 : vector<1x128xf32> to vector<2x128xf32>
    %190 = arith.mulf %189, %160 : vector<2x128xf32>
    %191 = vector.extract_strided_slice %2 {offsets = [15, 0], sizes = [1, 128], strides = [1, 1]} : vector<36x128xf32> to vector<1x128xf32>
    %192 = vector.broadcast %191 : vector<1x128xf32> to vector<2x128xf32>
    %193 = arith.mulf %192, %163 : vector<2x128xf32>
    %194 = vector.extract_strided_slice %2 {offsets = [16, 0], sizes = [1, 128], strides = [1, 1]} : vector<36x128xf32> to vector<1x128xf32>
    %195 = vector.broadcast %194 : vector<1x128xf32> to vector<2x128xf32>
    %196 = arith.mulf %195, %166 : vector<2x128xf32>
    %197 = vector.extract_strided_slice %2 {offsets = [17, 0], sizes = [1, 128], strides = [1, 1]} : vector<36x128xf32> to vector<1x128xf32>
    %198 = vector.broadcast %197 : vector<1x128xf32> to vector<2x128xf32>
    %199 = arith.mulf %198, %169 : vector<2x128xf32>
    %200 = vector.extract_strided_slice %2 {offsets = [18, 0], sizes = [1, 128], strides = [1, 1]} : vector<36x128xf32> to vector<1x128xf32>
    %201 = vector.broadcast %200 : vector<1x128xf32> to vector<2x128xf32>
    %202 = arith.mulf %201, %172 : vector<2x128xf32>
    %203 = vector.extract_strided_slice %2 {offsets = [19, 0], sizes = [1, 128], strides = [1, 1]} : vector<36x128xf32> to vector<1x128xf32>
    %204 = vector.broadcast %203 : vector<1x128xf32> to vector<2x128xf32>
    %205 = arith.mulf %204, %175 : vector<2x128xf32>
    %206 = vector.extract_strided_slice %2 {offsets = [20, 0], sizes = [1, 128], strides = [1, 1]} : vector<36x128xf32> to vector<1x128xf32>
    %207 = vector.broadcast %206 : vector<1x128xf32> to vector<2x128xf32>
    %208 = arith.mulf %207, %178 : vector<2x128xf32>
    %209 = vector.extract_strided_slice %2 {offsets = [21, 0], sizes = [1, 128], strides = [1, 1]} : vector<36x128xf32> to vector<1x128xf32>
    %210 = vector.broadcast %209 : vector<1x128xf32> to vector<2x128xf32>
    %211 = arith.mulf %210, %181 : vector<2x128xf32>
    %212 = arith.mulf %5, %184 : vector<2x128xf32>
    %213 = arith.mulf %14, %187 : vector<2x128xf32>
    %214 = arith.subf %212, %213 : vector<2x128xf32>
    %215 = arith.mulf %8, %187 : vector<2x128xf32>
    %216 = arith.mulf %17, %190 : vector<2x128xf32>
    %217 = arith.subf %215, %216 : vector<2x128xf32>
    %218 = arith.mulf %11, %190 : vector<2x128xf32>
    %219 = arith.mulf %20, %193 : vector<2x128xf32>
    %220 = arith.subf %218, %219 : vector<2x128xf32>
    %221 = arith.mulf %14, %193 : vector<2x128xf32>
    %222 = arith.mulf %23, %196 : vector<2x128xf32>
    %223 = arith.subf %221, %222 : vector<2x128xf32>
    %224 = arith.mulf %17, %196 : vector<2x128xf32>
    %225 = arith.mulf %26, %199 : vector<2x128xf32>
    %226 = arith.subf %224, %225 : vector<2x128xf32>
    %227 = arith.mulf %20, %199 : vector<2x128xf32>
    %228 = arith.mulf %29, %202 : vector<2x128xf32>
    %229 = arith.subf %227, %228 : vector<2x128xf32>
    %230 = arith.mulf %23, %202 : vector<2x128xf32>
    %231 = arith.mulf %32, %205 : vector<2x128xf32>
    %232 = arith.subf %230, %231 : vector<2x128xf32>
    %233 = arith.mulf %26, %205 : vector<2x128xf32>
    %234 = arith.mulf %35, %208 : vector<2x128xf32>
    %235 = arith.subf %233, %234 : vector<2x128xf32>
    %236 = arith.mulf %29, %208 : vector<2x128xf32>
    %237 = arith.mulf %38, %211 : vector<2x128xf32>
    %238 = arith.subf %236, %237 : vector<2x128xf32>
    %239 = vector.extract_strided_slice %2 {offsets = [24, 0], sizes = [1, 128], strides = [1, 1]} : vector<36x128xf32> to vector<1x128xf32>
    %240 = vector.broadcast %239 : vector<1x128xf32> to vector<2x128xf32>
    %241 = arith.mulf %240, %214 : vector<2x128xf32>
    %242 = vector.extract_strided_slice %2 {offsets = [25, 0], sizes = [1, 128], strides = [1, 1]} : vector<36x128xf32> to vector<1x128xf32>
    %243 = vector.broadcast %242 : vector<1x128xf32> to vector<2x128xf32>
    %244 = arith.mulf %243, %217 : vector<2x128xf32>
    %245 = vector.extract_strided_slice %2 {offsets = [26, 0], sizes = [1, 128], strides = [1, 1]} : vector<36x128xf32> to vector<1x128xf32>
    %246 = vector.broadcast %245 : vector<1x128xf32> to vector<2x128xf32>
    %247 = arith.mulf %246, %220 : vector<2x128xf32>
    %248 = vector.extract_strided_slice %2 {offsets = [27, 0], sizes = [1, 128], strides = [1, 1]} : vector<36x128xf32> to vector<1x128xf32>
    %249 = vector.broadcast %248 : vector<1x128xf32> to vector<2x128xf32>
    %250 = arith.mulf %249, %223 : vector<2x128xf32>
    %251 = vector.extract_strided_slice %2 {offsets = [28, 0], sizes = [1, 128], strides = [1, 1]} : vector<36x128xf32> to vector<1x128xf32>
    %252 = vector.broadcast %251 : vector<1x128xf32> to vector<2x128xf32>
    %253 = arith.mulf %252, %226 : vector<2x128xf32>
    %254 = vector.extract_strided_slice %2 {offsets = [29, 0], sizes = [1, 128], strides = [1, 1]} : vector<36x128xf32> to vector<1x128xf32>
    %255 = vector.broadcast %254 : vector<1x128xf32> to vector<2x128xf32>
    %256 = arith.mulf %255, %229 : vector<2x128xf32>
    %257 = vector.extract_strided_slice %2 {offsets = [30, 0], sizes = [1, 128], strides = [1, 1]} : vector<36x128xf32> to vector<1x128xf32>
    %258 = vector.broadcast %257 : vector<1x128xf32> to vector<2x128xf32>
    %259 = arith.mulf %258, %232 : vector<2x128xf32>
    %260 = vector.extract_strided_slice %2 {offsets = [31, 0], sizes = [1, 128], strides = [1, 1]} : vector<36x128xf32> to vector<1x128xf32>
    %261 = vector.broadcast %260 : vector<1x128xf32> to vector<2x128xf32>
    %262 = arith.mulf %261, %235 : vector<2x128xf32>
    %263 = vector.extract_strided_slice %2 {offsets = [32, 0], sizes = [1, 128], strides = [1, 1]} : vector<36x128xf32> to vector<1x128xf32>
    %264 = vector.broadcast %263 : vector<1x128xf32> to vector<2x128xf32>
    %265 = arith.mulf %264, %238 : vector<2x128xf32>
    %266 = arith.mulf %5, %241 : vector<2x128xf32>
    %267 = arith.mulf %17, %244 : vector<2x128xf32>
    %268 = arith.subf %266, %267 : vector<2x128xf32>
    %269 = arith.mulf %8, %244 : vector<2x128xf32>
    %270 = arith.mulf %20, %247 : vector<2x128xf32>
    %271 = arith.subf %269, %270 : vector<2x128xf32>
    %272 = arith.mulf %11, %247 : vector<2x128xf32>
    %273 = arith.mulf %23, %250 : vector<2x128xf32>
    %274 = arith.subf %272, %273 : vector<2x128xf32>
    %275 = arith.mulf %14, %250 : vector<2x128xf32>
    %276 = arith.mulf %26, %253 : vector<2x128xf32>
    %277 = arith.subf %275, %276 : vector<2x128xf32>
    %278 = arith.mulf %17, %253 : vector<2x128xf32>
    %279 = arith.mulf %29, %256 : vector<2x128xf32>
    %280 = arith.subf %278, %279 : vector<2x128xf32>
    %281 = arith.mulf %20, %256 : vector<2x128xf32>
    %282 = arith.mulf %32, %259 : vector<2x128xf32>
    %283 = arith.subf %281, %282 : vector<2x128xf32>
    %284 = arith.mulf %23, %259 : vector<2x128xf32>
    %285 = arith.mulf %35, %262 : vector<2x128xf32>
    %286 = arith.subf %284, %285 : vector<2x128xf32>
    %287 = arith.mulf %26, %262 : vector<2x128xf32>
    %288 = arith.mulf %38, %265 : vector<2x128xf32>
    %289 = arith.subf %287, %288 : vector<2x128xf32>
    %290 = arith.negf %0 : vector<2x128xf32>
    %291 = math.exp %290 : vector<2x128xf32>
    %cst_15 = arith.constant 1.000000e+00 : f32
    %292 = vector.broadcast %cst_15 : f32 to vector<2x128xf32>
    %293 = arith.addf %292, %291 : vector<2x128xf32>
    %294 = arith.divf %292, %293 : vector<2x128xf32>
    %295 = arith.mulf %0, %294 : vector<2x128xf32>
    %296 = tpu.concatenate %268, %271, %274, %277, %280, %283, %286, %289, %295 in 1 : vector<2x128xf32>, vector<2x128xf32>, vector<2x128xf32>, vector<2x128xf32>, vector<2x128xf32>, vector<2x128xf32>, vector<2x128xf32>, vector<2x128xf32>, vector<2x128xf32> -> vector<2x1152xf32>
    %c0_16 = arith.constant 0 : index
    %c0_17 = arith.constant 0 : index
    %297 = vector.load %arg4[%c0_16, %c0_17] : memref<1152x64xf32, #tpu.memory_space<vmem>>, vector<1152x64xf32>
    %cst_18 = arith.constant dense<0.000000e+00> : vector<2x64xf32>
    %298 = tpu.matmul %296, %297, %cst_18 {dimension_numbers = #tpu.dot_dimension_numbers<[1], [0], [0], [1], [0, 0, 1, 1], [], []>} : vector<2x1152xf32>, vector<1152x64xf32>, vector<2x64xf32> -> vector<2x64xf32>
    %c0_19 = arith.constant 0 : index
    %c0_20 = arith.constant 0 : index
    %299 = vector.load %arg5[%c0_19, %c0_20] : memref<2x64xf32, #tpu.memory_space<vmem>>, vector<2x64xf32>
    tpu.vector_store %arg5[%c0_19, %c0_20], %298 {strides = array<i32>} : memref<2x64xf32, #tpu.memory_space<vmem>>, vector<2x64xf32>,
    return
  }
  func.func @transform_0(%arg0: i32) -> (i32, i32) {
    %c0_i32 = arith.constant 0 : i32
    %c0_i32_0 = arith.constant 0 : i32
    return %arg0, %c0_i32 : i32, i32
  }
  func.func @transform_1(%arg0: i32) -> (i32, i32) {
    %c0_i32 = arith.constant 0 : i32
    %c0_i32_0 = arith.constant 0 : i32
    %c0_i32_1 = arith.constant 0 : i32
    return %c0_i32, %c0_i32_0 : i32, i32
  }
  func.func @transform_2(%arg0: i32) -> (i32, i32) {
    %c0_i32 = arith.constant 0 : i32
    %c0_i32_0 = arith.constant 0 : i32
    %c0_i32_1 = arith.constant 0 : i32
    return %c0_i32, %c0_i32_0 : i32, i32
  }
  func.func @transform_3(%arg0: i32) -> (i32, i32) {
    %c0_i32 = arith.constant 0 : i32
    %c0_i32_0 = arith.constant 0 : i32
    %c0_i32_1 = arith.constant 0 : i32
    return %c0_i32, %c0_i32_0 : i32, i32
  }
  func.func @transform_4(%arg0: i32) -> (i32, i32) {
    %c0_i32 = arith.constant 0 : i32
    %c0_i32_0 = arith.constant 0 : i32
    return %arg0, %c0_i32 : i32, i32
  }
}

</mosaic_0001>

<llo_original>
// kernel: tpu_custom_call.1
$region0: #{tpu_custom_call.1}
  #allocation0 [shape = 'u32[]', space=smem, size = 0x4, offset = 0x4, fixed_abs, tag = 'smem constant byte address 0x4 - core index']
  #allocation1 [shape = 'u32[144,128]{1,0:T(1,128)}', space=vmem, size = 0x12000, scoped, tag = 'internal scratch']
  %s0 = inlined_call_operand.hbm [shape: f32[2,128], index: 0, kind: input, shape index: {}]
  %s1 = inlined_call_operand.hbm [shape: f32[12,128], index: 1, kind: input, shape index: {}]
  %s2 = inlined_call_operand.hbm [shape: f32[36,128], index: 2, kind: input, shape index: {}]
  %s3 = inlined_call_operand.hbm [shape: f32[1152,64], index: 3, kind: input, shape index: {}]
  %s4 = inlined_call_operand.hbm [shape: f32[2,64], index: 4, kind: output, shape index: {}]
  %s5 = sld [smem:[#allocation0]]
  $region42: #{tpu_custom_call.1} parent=0
    _
  %s7 = ssub.s32 1, %s5
  %s8 = scalar_select 0, %s7, %s5
  $region1: #{tpu_custom_call.1} parent=0
    #allocation2 [shape = 'u8[1024]{0}', space=vmem, size = 0x400, scoped, tag = 'input window, operand 0, single buffered']
    #allocation3 [shape = 's32[1]{0}', space=sflag, size = 0x4, scoped, tag = 'scoped memory for tpu_custom_call.1']
    #allocation4 [shape = 's32[1]{0}', space=sflag, size = 0x4, scoped, tag = 'scoped memory for tpu_custom_call.1']
    #allocation5 [shape = 'u8[8192]{0}', space=vmem, size = 0x2000, scoped, tag = 'input window, operand 1, single buffered']
    #allocation6 [shape = 's32[1]{0}', space=sflag, size = 0x4, scoped, tag = 'scoped memory for tpu_custom_call.1']
    #allocation7 [shape = 'u8[20480]{0}', space=vmem, size = 0x5000, scoped, tag = 'input window, operand 2, single buffered']
    #allocation8 [shape = 'u8[589824]{0}', space=vmem, size = 0x90000, scoped, tag = 'input window, operand 3, single buffered']
    #allocation9 [shape = 's32[1]{0}', space=sflag, size = 0x4, scoped, tag = 'scoped memory for tpu_custom_call.1']
    #allocation10 [shape = 'u8[1024]{0}', space=vmem, size = 0x400, scoped, tag = 'output window, operand 0, single buffered']
    %9 = vsyncpa [#allocation3], 0
    %10 = vsyncpa [#allocation6], 0
    %11 = vsyncpa [#allocation9], 0
    %12 = vsyncpa [#allocation4], 0
    // Predicated region
    $region2: #{tpu_custom_call.1} parent=1 // pred_check
      _
    $region3: #{tpu_custom_call.1} parent=1 // pred_check_branch
      %14 = sbr.rel (0) target = $region5
    $region4: #{tpu_custom_call.1} parent=1 // pred_region
      %s16 = ssub.s32 32, 32
      %17 = vsyncadd [#allocation3], %s16
      %s19 = sshll.u32 [#allocation2], 4
      %s20 = int_to_ptr.vmem [resolvable:$true] %s19
      %22 = dma.hbm_to_vmem [thread:$0]  %s0, 32, %s20, [#allocation3]
    $region5: #{tpu_custom_call.1} parent=1 // pred_fallthru
      _
    // Predicated region
    $region6: #{tpu_custom_call.1} parent=1 // pred_check
      _
    $region7: #{tpu_custom_call.1} parent=1 // pred_check_branch
      %24 = sbr.rel (0) target = $region9
    $region8: #{tpu_custom_call.1} parent=1 // pred_region
      %s26 = ssub.s32 256, 256
      %27 = vsyncadd [#allocation6], %s26
      %s28 = sshll.u32 [#allocation5], 4
      %s29 = int_to_ptr.vmem [resolvable:$true] %s28
      %34 = dma.hbm_to_vmem [thread:$0]  %s1, 256, %s29, [#allocation6], 128, 128, 8
    $region9: #{tpu_custom_call.1} parent=1 // pred_fallthru
      _
    // Predicated region
    $region10: #{tpu_custom_call.1} parent=1 // pred_check
      _
    $region11: #{tpu_custom_call.1} parent=1 // pred_check_branch
      %36 = sbr.rel (0) target = $region13
    $region12: #{tpu_custom_call.1} parent=1 // pred_region
      %s38 = ssub.s32 640, 640
      %39 = vsyncadd [#allocation6], %s38
      %s40 = sshll.u32 [#allocation7], 4
      %s41 = int_to_ptr.vmem [resolvable:$true] %s40
      %46 = dma.hbm_to_vmem [thread:$0]  %s2, 640, %s41, [#allocation6], 128, 128, 8
    $region13: #{tpu_custom_call.1} parent=1 // pred_fallthru
      _
    // Predicated region
    $region14: #{tpu_custom_call.1} parent=1 // pred_check
      _
    $region15: #{tpu_custom_call.1} parent=1 // pred_check_branch
      %48 = sbr.rel (0) target = $region17
    $region16: #{tpu_custom_call.1} parent=1 // pred_region
      %s50 = ssub.s32 18432, 18432
      %51 = vsyncadd [#allocation9], %s50
      %s52 = sshll.u32 [#allocation8], 4
      %s53 = int_to_ptr.vmem [resolvable:$true] %s52
      %58 = dma.hbm_to_vmem [thread:$0]  %s3, 18432, %s53, [#allocation9], 128, 128, 8
    $region17: #{tpu_custom_call.1} parent=1 // pred_fallthru
      _
    // Predicated region
    $region18: #{tpu_custom_call.1} parent=1 // pred_check
      _
    $region19: #{tpu_custom_call.1} parent=1 // pred_check_branch
      %60 = sbr.rel (0) target = $region21
    $region20: #{tpu_custom_call.1} parent=1 // pred_region
      %61 = dma.done [#allocation3], 32
    $region21: #{tpu_custom_call.1} parent=1 // pred_fallthru
      _
    // Predicated region
    $region22: #{tpu_custom_call.1} parent=1 // pred_check
      _
    $region23: #{tpu_custom_call.1} parent=1 // pred_check_branch
      %63 = sbr.rel (0) target = $region25
    $region24: #{tpu_custom_call.1} parent=1 // pred_region
      %64 = dma.done [#allocation6], 256
    $region25: #{tpu_custom_call.1} parent=1 // pred_fallthru
      _
    // Predicated region
    $region26: #{tpu_custom_call.1} parent=1 // pred_check
      _
    $region27: #{tpu_custom_call.1} parent=1 // pred_check_branch
      %66 = sbr.rel (0) target = $region29
    $region28: #{tpu_custom_call.1} parent=1 // pred_region
      %67 = dma.done [#allocation6], 640
    $region29: #{tpu_custom_call.1} parent=1 // pred_fallthru
      _
    // Predicated region
    $region30: #{tpu_custom_call.1} parent=1 // pred_check
      _
    $region31: #{tpu_custom_call.1} parent=1 // pred_check_branch
      %69 = sbr.rel (0) target = $region33
    $region32: #{tpu_custom_call.1} parent=1 // pred_region
      %70 = dma.done [#allocation9], 18432
    $region33: #{tpu_custom_call.1} parent=1 // pred_fallthru
      _
    %v71 = vld [vmem:[#allocation2] sm:$0x3]
    %v72 = vld [vmem:[#allocation5] sm:$0xff]
    %v73 = vld [vmem:[#allocation5 + $0x8] sm:$0xf]
    %v74 = vld [vmem:[#allocation7] sm:$0xff]
    %v75 = vld [vmem:[#allocation7 + $0x8] sm:$0xff]
    %v76 = vld [vmem:[#allocation7 + $0x10] sm:$0xff]
    %v77 = vld [vmem:[#allocation7 + $0x18] sm:$0xff]
    %v78 = vld [vmem:[#allocation7 + $0x20] sm:$0xf]
    %v79 = vlaneseq
    %v80 = vshrl.u32 %v79, 7
    %v81 = vsub.s32 0, %v80
    %v82 = vrot.slane %v72, %v81
    %v83 = vsub.f32 %v71, %v82
    %v84 = vlaneseq
    %v85 = vshrl.u32 %v84, 7
    %v86 = vsub.s32 1, %v85
    %v87 = vrot.slane %v72, %v86
    %v88 = vsub.f32 %v71, %v87
    %v89 = vlaneseq
    %v90 = vshrl.u32 %v89, 7
    %v91 = vsub.s32 2, %v90
    %v92 = vrot.slane %v72, %v91
    %v93 = vsub.f32 %v71, %v92
    %v94 = vlaneseq
    %v95 = vshrl.u32 %v94, 7
    %v96 = vsub.s32 3, %v95
    %v97 = vrot.slane %v72, %v96
    %v98 = vsub.f32 %v71, %v97
    %v99 = vlaneseq
    %v100 = vshrl.u32 %v99, 7
    %v101 = vsub.s32 4, %v100
    %v102 = vrot.slane %v72, %v101
    %v103 = vsub.f32 %v71, %v102
    %v104 = vlaneseq
    %v105 = vshrl.u32 %v104, 7
    %v106 = vsub.s32 5, %v105
    %v107 = vrot.slane %v72, %v106
    %v108 = vsub.f32 %v71, %v107
    %v109 = vlaneseq
    %v110 = vshrl.u32 %v109, 7
    %v111 = vsub.s32 6, %v110
    %v112 = vrot.slane %v72, %v111
    %v113 = vsub.f32 %v71, %v112
    %v114 = vlaneseq
    %v115 = vshrl.u32 %v114, 7
    %v116 = vsub.s32 7, %v115
    %v117 = vrot.slane %v72, %v116
    %v118 = vsub.f32 %v71, %v117
    %v119 = vlaneseq
    %v120 = vshrl.u32 %v119, 7
    %v121 = vsub.s32 0, %v120
    %v122 = vrot.slane %v73, %v121
    %v123 = vsub.f32 %v71, %v122
    %v124 = vlaneseq
    %v125 = vshrl.u32 %v124, 7
    %v126 = vsub.s32 1, %v125
    %v127 = vrot.slane %v73, %v126
    %v128 = vsub.f32 %v71, %v127
    %v129 = vlaneseq
    %v130 = vshrl.u32 %v129, 7
    %v131 = vsub.s32 2, %v130
    %v132 = vrot.slane %v73, %v131
    %v133 = vsub.f32 %v71, %v132
    %v134 = vlaneseq
    %v135 = vshrl.u32 %v134, 7
    %v136 = vsub.s32 3, %v135
    %v137 = vrot.slane %v73, %v136
    %v138 = vsub.f32 %v71, %v137
    %vm139 = vcmp.ge.f32.partialorder %v71, %v82
    %vm140 = vcmp.ge.f32.partialorder %v71, %v87
    %vm141 = vcmp.ge.f32.partialorder %v71, %v92
    %vm142 = vcmp.ge.f32.partialorder %v71, %v97
    %vm143 = vcmp.ge.f32.partialorder %v71, %v102
    %vm144 = vcmp.ge.f32.partialorder %v71, %v107
    %vm145 = vcmp.ge.f32.partialorder %v71, %v112
    %vm146 = vcmp.ge.f32.partialorder %v71, %v117
    %vm147 = vcmp.ge.f32.partialorder %v71, %v122
    %vm148 = vcmp.ge.f32.partialorder %v71, %v127
    %vm149 = vcmp.ge.f32.partialorder %v71, %v132
    %vm150 = vcmp.ge.f32.partialorder %v71, %v137
    %vm151 = vmxor %vm140, 1
    %vm152 = vmand %vm139, %vm151
    %v153 = vsel %vm152, 1, 0
    %v154 = vcvt.s32.f32 %v153
    %vm155 = vmxor %vm141, 1
    %vm156 = vmand %vm140, %vm155
    %v157 = vsel %vm156, 1, 0
    %v158 = vcvt.s32.f32 %v157
    %vm159 = vmxor %vm142, 1
    %vm160 = vmand %vm141, %vm159
    %v161 = vsel %vm160, 1, 0
    %v162 = vcvt.s32.f32 %v161
    %vm163 = vmxor %vm143, 1
    %vm164 = vmand %vm142, %vm163
    %v165 = vsel %vm164, 1, 0
    %v166 = vcvt.s32.f32 %v165
    %vm167 = vmxor %vm144, 1
    %vm168 = vmand %vm143, %vm167
    %v169 = vsel %vm168, 1, 0
    %v170 = vcvt.s32.f32 %v169
    %vm171 = vmxor %vm145, 1
    %vm172 = vmand %vm144, %vm171
    %v173 = vsel %vm172, 1, 0
    %v174 = vcvt.s32.f32 %v173
    %vm175 = vmxor %vm146, 1
    %vm176 = vmand %vm145, %vm175
    %v177 = vsel %vm176, 1, 0
    %v178 = vcvt.s32.f32 %v177
    %vm179 = vmxor %vm147, 1
    %vm180 = vmand %vm146, %vm179
    %v181 = vsel %vm180, 1, 0
    %v182 = vcvt.s32.f32 %v181
    %vm183 = vmxor %vm148, 1
    %vm184 = vmand %vm147, %vm183
    %v185 = vsel %vm184, 1, 0
    %v186 = vcvt.s32.f32 %v185
    %vm187 = vmxor %vm149, 1
    %vm188 = vmand %vm148, %vm187
    %v189 = vsel %vm188, 1, 0
    %v190 = vcvt.s32.f32 %v189
    %vm191 = vmxor %vm150, 1
    %vm192 = vmand %vm149, %vm191
    %v193 = vsel %vm192, 1, 0
    %v194 = vcvt.s32.f32 %v193
    %v195 = vlaneseq
    %v196 = vshrl.u32 %v195, 7
    %v197 = vsub.s32 0, %v196
    %v198 = vrot.slane %v74, %v197
    %v199 = vmul.f32 %v198, %v154
    %v200 = vlaneseq
    %v201 = vshrl.u32 %v200, 7
    %v202 = vsub.s32 1, %v201
    %v203 = vrot.slane %v74, %v202
    %v204 = vmul.f32 %v203, %v158
    %v205 = vlaneseq
    %v206 = vshrl.u32 %v205, 7
    %v207 = vsub.s32 2, %v206
    %v208 = vrot.slane %v74, %v207
    %v209 = vmul.f32 %v208, %v162
    %v210 = vlaneseq
    %v211 = vshrl.u32 %v210, 7
    %v212 = vsub.s32 3, %v211
    %v213 = vrot.slane %v74, %v212
    %v214 = vmul.f32 %v213, %v166
    %v215 = vlaneseq
    %v216 = vshrl.u32 %v215, 7
    %v217 = vsub.s32 4, %v216
    %v218 = vrot.slane %v74, %v217
    %v219 = vmul.f32 %v218, %v170
    %v220 = vlaneseq
    %v221 = vshrl.u32 %v220, 7
    %v222 = vsub.s32 5, %v221
    %v223 = vrot.slane %v74, %v222
    %v224 = vmul.f32 %v223, %v174
    %v225 = vlaneseq
    %v226 = vshrl.u32 %v225, 7
    %v227 = vsub.s32 6, %v226
    %v228 = vrot.slane %v74, %v227
    %v229 = vmul.f32 %v228, %v178
    %v230 = vlaneseq
    %v231 = vshrl.u32 %v230, 7
    %v232 = vsub.s32 7, %v231
    %v233 = vrot.slane %v74, %v232
    %v234 = vmul.f32 %v233, %v182
    %v235 = vlaneseq
    %v236 = vshrl.u32 %v235, 7
    %v237 = vsub.s32 0, %v236
    %v238 = vrot.slane %v75, %v237
    %v239 = vmul.f32 %v238, %v186
    %v240 = vlaneseq
    %v241 = vshrl.u32 %v240, 7
    %v242 = vsub.s32 1, %v241
    %v243 = vrot.slane %v75, %v242
    %v244 = vmul.f32 %v243, %v190
    %v245 = vlaneseq
    %v246 = vshrl.u32 %v245, 7
    %v247 = vsub.s32 2, %v246
    %v248 = vrot.slane %v75, %v247
    %v249 = vmul.f32 %v248, %v194
    %v250 = vmul.f32 %v83, %v199
    %v251 = vmul.f32 %v93, %v204
    %v252 = vsub.f32 %v250, %v251
    %v253 = vmul.f32 %v88, %v204
    %v254 = vmul.f32 %v98, %v209
    %v255 = vsub.f32 %v253, %v254
    %v256 = vmul.f32 %v93, %v209
    %v257 = vmul.f32 %v103, %v214
    %v258 = vsub.f32 %v256, %v257
    %v259 = vmul.f32 %v98, %v214
    %v260 = vmul.f32 %v108, %v219
    %v261 = vsub.f32 %v259, %v260
    %v262 = vmul.f32 %v103, %v219
    %v263 = vmul.f32 %v113, %v224
    %v264 = vsub.f32 %v262, %v263
    %v265 = vmul.f32 %v108, %v224
    %v266 = vmul.f32 %v118, %v229
    %v267 = vsub.f32 %v265, %v266
    %v268 = vmul.f32 %v113, %v229
    %v269 = vmul.f32 %v123, %v234
    %v270 = vsub.f32 %v268, %v269
    %v271 = vmul.f32 %v118, %v234
    %v272 = vmul.f32 %v128, %v239
    %v273 = vsub.f32 %v271, %v272
    %v274 = vmul.f32 %v123, %v239
    %v275 = vmul.f32 %v133, %v244
    %v276 = vsub.f32 %v274, %v275
    %v277 = vmul.f32 %v128, %v244
    %v278 = vmul.f32 %v138, %v249
    %v279 = vsub.f32 %v277, %v278
    %v280 = vlaneseq
    %v281 = vshrl.u32 %v280, 7
    %v282 = vsub.s32 4, %v281
    %v283 = vrot.slane %v75, %v282
    %v284 = vmul.f32 %v283, %v252
    %v285 = vlaneseq
    %v286 = vshrl.u32 %v285, 7
    %v287 = vsub.s32 5, %v286
    %v288 = vrot.slane %v75, %v287
    %v289 = vmul.f32 %v288, %v255
    %v290 = vlaneseq
    %v291 = vshrl.u32 %v290, 7
    %v292 = vsub.s32 6, %v291
    %v293 = vrot.slane %v75, %v292
    %v294 = vmul.f32 %v293, %v258
    %v295 = vlaneseq
    %v296 = vshrl.u32 %v295, 7
    %v297 = vsub.s32 7, %v296
    %v298 = vrot.slane %v75, %v297
    %v299 = vmul.f32 %v298, %v261
    %v300 = vlaneseq
    %v301 = vshrl.u32 %v300, 7
    %v302 = vsub.s32 0, %v301
    %v303 = vrot.slane %v76, %v302
    %v304 = vmul.f32 %v303, %v264
    %v305 = vlaneseq
    %v306 = vshrl.u32 %v305, 7
    %v307 = vsub.s32 1, %v306
    %v308 = vrot.slane %v76, %v307
    %v309 = vmul.f32 %v308, %v267
    %v310 = vlaneseq
    %v311 = vshrl.u32 %v310, 7
    %v312 = vsub.s32 2, %v311
    %v313 = vrot.slane %v76, %v312
    %v314 = vmul.f32 %v313, %v270
    %v315 = vlaneseq
    %v316 = vshrl.u32 %v315, 7
    %v317 = vsub.s32 3, %v316
    %v318 = vrot.slane %v76, %v317
    %v319 = vmul.f32 %v318, %v273
    %v320 = vlaneseq
    %v321 = vshrl.u32 %v320, 7
    %v322 = vsub.s32 4, %v321
    %v323 = vrot.slane %v76, %v322
    %v324 = vmul.f32 %v323, %v276
    %v325 = vlaneseq
    %v326 = vshrl.u32 %v325, 7
    %v327 = vsub.s32 5, %v326
    %v328 = vrot.slane %v76, %v327
    %v329 = vmul.f32 %v328, %v279
    %v330 = vmul.f32 %v83, %v284
    %v331 = vmul.f32 %v98, %v289
    %v332 = vsub.f32 %v330, %v331
    %v333 = vmul.f32 %v88, %v289
    %v334 = vmul.f32 %v103, %v294
    %v335 = vsub.f32 %v333, %v334
    %v336 = vmul.f32 %v93, %v294
    %v337 = vmul.f32 %v108, %v299
    %v338 = vsub.f32 %v336, %v337
    %v339 = vmul.f32 %v98, %v299
    %v340 = vmul.f32 %v113, %v304
    %v341 = vsub.f32 %v339, %v340
    %v342 = vmul.f32 %v103, %v304
    %v343 = vmul.f32 %v118, %v309
    %v344 = vsub.f32 %v342, %v343
    %v345 = vmul.f32 %v108, %v309
    %v346 = vmul.f32 %v123, %v314
    %v347 = vsub.f32 %v345, %v346
    %v348 = vmul.f32 %v113, %v314
    %v349 = vmul.f32 %v128, %v319
    %v350 = vsub.f32 %v348, %v349
    %v351 = vmul.f32 %v118, %v319
    %v352 = vmul.f32 %v133, %v324
    %v353 = vsub.f32 %v351, %v352
    %v354 = vmul.f32 %v123, %v324
    %v355 = vmul.f32 %v138, %v329
    %v356 = vsub.f32 %v354, %v355
    %v357 = vlaneseq
    %v358 = vshrl.u32 %v357, 7
    %v359 = vsub.s32 0, %v358
    %v360 = vrot.slane %v77, %v359
    %v361 = vmul.f32 %v360, %v332
    %v362 = vlaneseq
    %v363 = vshrl.u32 %v362, 7
    %v364 = vsub.s32 1, %v363
    %v365 = vrot.slane %v77, %v364
    %v366 = vmul.f32 %v365, %v335
    %v367 = vlaneseq
    %v368 = vshrl.u32 %v367, 7
    %v369 = vsub.s32 2, %v368
    %v370 = vrot.slane %v77, %v369
    %v371 = vmul.f32 %v370, %v338
    %v372 = vlaneseq
    %v373 = vshrl.u32 %v372, 7
    %v374 = vsub.s32 3, %v373
    %v375 = vrot.slane %v77, %v374
    %v376 = vmul.f32 %v375, %v341
    %v377 = vlaneseq
    %v378 = vshrl.u32 %v377, 7
    %v379 = vsub.s32 4, %v378
    %v380 = vrot.slane %v77, %v379
    %v381 = vmul.f32 %v380, %v344
    %v382 = vlaneseq
    %v383 = vshrl.u32 %v382, 7
    %v384 = vsub.s32 5, %v383
    %v385 = vrot.slane %v77, %v384
    %v386 = vmul.f32 %v385, %v347
    %v387 = vlaneseq
    %v388 = vshrl.u32 %v387, 7
    %v389 = vsub.s32 6, %v388
    %v390 = vrot.slane %v77, %v389
    %v391 = vmul.f32 %v390, %v350
    %v392 = vlaneseq
    %v393 = vshrl.u32 %v392, 7
    %v394 = vsub.s32 7, %v393
    %v395 = vrot.slane %v77, %v394
    %v396 = vmul.f32 %v395, %v353
    %v397 = vlaneseq
    %v398 = vshrl.u32 %v397, 7
    %v399 = vsub.s32 0, %v398
    %v400 = vrot.slane %v78, %v399
    %v401 = vmul.f32 %v400, %v356
    %v402 = vmul.f32 %v83, %v361
    %v403 = vmul.f32 %v103, %v366
    %v404 = vsub.f32 %v402, %v403
    %v405 = vmul.f32 %v88, %v366
    %v406 = vmul.f32 %v108, %v371
    %v407 = vsub.f32 %v405, %v406
    %v408 = vmul.f32 %v93, %v371
    %v409 = vmul.f32 %v113, %v376
    %v410 = vsub.f32 %v408, %v409
    %v411 = vmul.f32 %v98, %v376
    %v412 = vmul.f32 %v118, %v381
    %v413 = vsub.f32 %v411, %v412
    %v414 = vmul.f32 %v103, %v381
    %v415 = vmul.f32 %v123, %v386
    %v416 = vsub.f32 %v414, %v415
    %v417 = vmul.f32 %v108, %v386
    %v418 = vmul.f32 %v128, %v391
    %v419 = vsub.f32 %v417, %v418
    %v420 = vmul.f32 %v113, %v391
    %v421 = vmul.f32 %v133, %v396
    %v422 = vsub.f32 %v420, %v421
    %v423 = vmul.f32 %v118, %v396
    %v424 = vmul.f32 %v138, %v401
    %v425 = vsub.f32 %v423, %v424
    %v426 = vxor.u32 %v71, 2147483648
    %v427 = vmul.f32 %v426, 1.442695
    %v428 = vpow.pop %v427
    %v429 = vadd.f32 %v428, 1.0
    %v430 = vrcp.pop %v429
    %v431 = vmul.f32 1.0, %v430
    %v432 = vmul.f32 %v71, %v431
    %v433 = vld [vmem:[#allocation8] sm:$0xff]
    %v434 = vld [vmem:[#allocation8 + $0x8] sm:$0xff]
    %v435 = vld [vmem:[#allocation8 + $0x10] sm:$0xff]
    %v436 = vld [vmem:[#allocation8 + $0x18] sm:$0xff]
    %v437 = vld [vmem:[#allocation8 + $0x20] sm:$0xff]
    %v438 = vld [vmem:[#allocation8 + $0x28] sm:$0xff]
    %v439 = vld [vmem:[#allocation8 + $0x30] sm:$0xff]
    %v440 = vld [vmem:[#allocation8 + $0x38] sm:$0xff]
    %v441 = vld [vmem:[#allocation8 + $0x40] sm:$0xff]
    %v442 = vld [vmem:[#allocation8 + $0x48] sm:$0xff]
    %v443 = vld [vmem:[#allocation8 + $0x50] sm:$0xff]
    %v444 = vld [vmem:[#allocation8 + $0x58] sm:$0xff]
    %v445 = vld [vmem:[#allocation8 + $0x60] sm:$0xff]
    %v446 = vld [vmem:[#allocation8 + $0x68] sm:$0xff]
    %v447 = vld [vmem:[#allocation8 + $0x70] sm:$0xff]
    %v448 = vld [vmem:[#allocation8 + $0x78] sm:$0xff]
    %v449 = vld [vmem:[#allocation8 + $0x80] sm:$0xff]
    %v450 = vld [vmem:[#allocation8 + $0x88] sm:$0xff]
    %v451 = vld [vmem:[#allocation8 + $0x90] sm:$0xff]
    %v452 = vld [vmem:[#allocation8 + $0x98] sm:$0xff]
    %v453 = vld [vmem:[#allocation8 + $0xa0] sm:$0xff]
    %v454 = vld [vmem:[#allocation8 + $0xa8] sm:$0xff]
    %v455 = vld [vmem:[#allocation8 + $0xb0] sm:$0xff]
    %v456 = vld [vmem:[#allocation8 + $0xb8] sm:$0xff]
    %v457 = vld [vmem:[#allocation8 + $0xc0] sm:$0xff]
    %v458 = vld [vmem:[#allocation8 + $0xc8] sm:$0xff]
    %v459 = vld [vmem:[#allocation8 + $0xd0] sm:$0xff]
    %v460 = vld [vmem:[#allocation8 + $0xd8] sm:$0xff]
    %v461 = vld [vmem:[#allocation8 + $0xe0] sm:$0xff]
    %v462 = vld [vmem:[#allocation8 + $0xe8] sm:$0xff]
    %v463 = vld [vmem:[#allocation8 + $0xf0] sm:$0xff]
    %v464 = vld [vmem:[#allocation8 + $0xf8] sm:$0xff]
    %v465 = vld [vmem:[#allocation8 + $0x100] sm:$0xff]
    %v466 = vld [vmem:[#allocation8 + $0x108] sm:$0xff]
    %v467 = vld [vmem:[#allocation8 + $0x110] sm:$0xff]
    %v468 = vld [vmem:[#allocation8 + $0x118] sm:$0xff]
    %v469 = vld [vmem:[#allocation8 + $0x120] sm:$0xff]
    %v470 = vld [vmem:[#allocation8 + $0x128] sm:$0xff]
    %v471 = vld [vmem:[#allocation8 + $0x130] sm:$0xff]
    %v472 = vld [vmem:[#allocation8 + $0x138] sm:$0xff]
    %v473 = vld [vmem:[#allocation8 + $0x140] sm:$0xff]
    %v474 = vld [vmem:[#allocation8 + $0x148] sm:$0xff]
    %v475 = vld [vmem:[#allocation8 + $0x150] sm:$0xff]
    %v476 = vld [vmem:[#allocation8 + $0x158] sm:$0xff]
    %v477 = vld [vmem:[#allocation8 + $0x160] sm:$0xff]
    %v478 = vld [vmem:[#allocation8 + $0x168] sm:$0xff]
    %v479 = vld [vmem:[#allocation8 + $0x170] sm:$0xff]
    %v480 = vld [vmem:[#allocation8 + $0x178] sm:$0xff]
    %v481 = vld [vmem:[#allocation8 + $0x180] sm:$0xff]
    %v482 = vld [vmem:[#allocation8 + $0x188] sm:$0xff]
    %v483 = vld [vmem:[#allocation8 + $0x190] sm:$0xff]
    %v484 = vld [vmem:[#allocation8 + $0x198] sm:$0xff]
    %v485 = vld [vmem:[#allocation8 + $0x1a0] sm:$0xff]
    %v486 = vld [vmem:[#allocation8 + $0x1a8] sm:$0xff]
    %v487 = vld [vmem:[#allocation8 + $0x1b0] sm:$0xff]
    %v488 = vld [vmem:[#allocation8 + $0x1b8] sm:$0xff]
    %v489 = vld [vmem:[#allocation8 + $0x1c0] sm:$0xff]
    %v490 = vld [vmem:[#allocation8 + $0x1c8] sm:$0xff]
    %v491 = vld [vmem:[#allocation8 + $0x1d0] sm:$0xff]
    %v492 = vld [vmem:[#allocation8 + $0x1d8] sm:$0xff]
    %v493 = vld [vmem:[#allocation8 + $0x1e0] sm:$0xff]
    %v494 = vld [vmem:[#allocation8 + $0x1e8] sm:$0xff]
    %v495 = vld [vmem:[#allocation8 + $0x1f0] sm:$0xff]
    %v496 = vld [vmem:[#allocation8 + $0x1f8] sm:$0xff]
    %v497 = vld [vmem:[#allocation8 + $0x200] sm:$0xff]
    %v498 = vld [vmem:[#allocation8 + $0x208] sm:$0xff]
    %v499 = vld [vmem:[#allocation8 + $0x210] sm:$0xff]
    %v500 = vld [vmem:[#allocation8 + $0x218] sm:$0xff]
    %v501 = vld [vmem:[#allocation8 + $0x220] sm:$0xff]
    %v502 = vld [vmem:[#allocation8 + $0x228] sm:$0xff]
    %v503 = vld [vmem:[#allocation8 + $0x230] sm:$0xff]
    %v504 = vld [vmem:[#allocation8 + $0x238] sm:$0xff]
    %v505 = vld [vmem:[#allocation8 + $0x240] sm:$0xff]
    %v506 = vld [vmem:[#allocation8 + $0x248] sm:$0xff]
    %v507 = vld [vmem:[#allocation8 + $0x250] sm:$0xff]
    %v508 = vld [vmem:[#allocation8 + $0x258] sm:$0xff]
    %v509 = vld [vmem:[#allocation8 + $0x260] sm:$0xff]
    %v510 = vld [vmem:[#allocation8 + $0x268] sm:$0xff]
    %v511 = vld [vmem:[#allocation8 + $0x270] sm:$0xff]
    %v512 = vld [vmem:[#allocation8 + $0x278] sm:$0xff]
    %v513 = vld [vmem:[#allocation8 + $0x280] sm:$0xff]
    %v514 = vld [vmem:[#allocation8 + $0x288] sm:$0xff]
    %v515 = vld [vmem:[#allocation8 + $0x290] sm:$0xff]
    %v516 = vld [vmem:[#allocation8 + $0x298] sm:$0xff]
    %v517 = vld [vmem:[#allocation8 + $0x2a0] sm:$0xff]
    %v518 = vld [vmem:[#allocation8 + $0x2a8] sm:$0xff]
    %v519 = vld [vmem:[#allocation8 + $0x2b0] sm:$0xff]
    %v520 = vld [vmem:[#allocation8 + $0x2b8] sm:$0xff]
    %v521 = vld [vmem:[#allocation8 + $0x2c0] sm:$0xff]
    %v522 = vld [vmem:[#allocation8 + $0x2c8] sm:$0xff]
    %v523 = vld [vmem:[#allocation8 + $0x2d0] sm:$0xff]
    %v524 = vld [vmem:[#allocation8 + $0x2d8] sm:$0xff]
    %v525 = vld [vmem:[#allocation8 + $0x2e0] sm:$0xff]
    %v526 = vld [vmem:[#allocation8 + $0x2e8] sm:$0xff]
    %v527 = vld [vmem:[#allocation8 + $0x2f0] sm:$0xff]
    %v528 = vld [vmem:[#allocation8 + $0x2f8] sm:$0xff]
    %v529 = vld [vmem:[#allocation8 + $0x300] sm:$0xff]
    %v530 = vld [vmem:[#allocation8 + $0x308] sm:$0xff]
    %v531 = vld [vmem:[#allocation8 + $0x310] sm:$0xff]
    %v532 = vld [vmem:[#allocation8 + $0x318] sm:$0xff]
    %v533 = vld [vmem:[#allocation8 + $0x320] sm:$0xff]
    %v534 = vld [vmem:[#allocation8 + $0x328] sm:$0xff]
    %v535 = vld [vmem:[#allocation8 + $0x330] sm:$0xff]
    %v536 = vld [vmem:[#allocation8 + $0x338] sm:$0xff]
    %v537 = vld [vmem:[#allocation8 + $0x340] sm:$0xff]
    %v538 = vld [vmem:[#allocation8 + $0x348] sm:$0xff]
    %v539 = vld [vmem:[#allocation8 + $0x350] sm:$0xff]
    %v540 = vld [vmem:[#allocation8 + $0x358] sm:$0xff]
    %v541 = vld [vmem:[#allocation8 + $0x360] sm:$0xff]
    %v542 = vld [vmem:[#allocation8 + $0x368] sm:$0xff]
    %v543 = vld [vmem:[#allocation8 + $0x370] sm:$0xff]
    %v544 = vld [vmem:[#allocation8 + $0x378] sm:$0xff]
    %v545 = vld [vmem:[#allocation8 + $0x380] sm:$0xff]
    %v546 = vld [vmem:[#allocation8 + $0x388] sm:$0xff]
    %v547 = vld [vmem:[#allocation8 + $0x390] sm:$0xff]
    %v548 = vld [vmem:[#allocation8 + $0x398] sm:$0xff]
    %v549 = vld [vmem:[#allocation8 + $0x3a0] sm:$0xff]
    %v550 = vld [vmem:[#allocation8 + $0x3a8] sm:$0xff]
    %v551 = vld [vmem:[#allocation8 + $0x3b0] sm:$0xff]
    %v552 = vld [vmem:[#allocation8 + $0x3b8] sm:$0xff]
    %v553 = vld [vmem:[#allocation8 + $0x3c0] sm:$0xff]
    %v554 = vld [vmem:[#allocation8 + $0x3c8] sm:$0xff]
    %v555 = vld [vmem:[#allocation8 + $0x3d0] sm:$0xff]
    %v556 = vld [vmem:[#allocation8 + $0x3d8] sm:$0xff]
    %v557 = vld [vmem:[#allocation8 + $0x3e0] sm:$0xff]
    %v558 = vld [vmem:[#allocation8 + $0x3e8] sm:$0xff]
    %v559 = vld [vmem:[#allocation8 + $0x3f0] sm:$0xff]
    %v560 = vld [vmem:[#allocation8 + $0x3f8] sm:$0xff]
    %v561 = vld [vmem:[#allocation8 + $0x400] sm:$0xff]
    %v562 = vld [vmem:[#allocation8 + $0x408] sm:$0xff]
    %v563 = vld [vmem:[#allocation8 + $0x410] sm:$0xff]
    %v564 = vld [vmem:[#allocation8 + $0x418] sm:$0xff]
    %v565 = vld [vmem:[#allocation8 + $0x420] sm:$0xff]
    %v566 = vld [vmem:[#allocation8 + $0x428] sm:$0xff]
    %v567 = vld [vmem:[#allocation8 + $0x430] sm:$0xff]
    %v568 = vld [vmem:[#allocation8 + $0x438] sm:$0xff]
    %v569 = vld [vmem:[#allocation8 + $0x440] sm:$0xff]
    %v570 = vld [vmem:[#allocation8 + $0x448] sm:$0xff]
    %v571 = vld [vmem:[#allocation8 + $0x450] sm:$0xff]
    %v572 = vld [vmem:[#allocation8 + $0x458] sm:$0xff]
    %v573 = vld [vmem:[#allocation8 + $0x460] sm:$0xff]
    %v574 = vld [vmem:[#allocation8 + $0x468] sm:$0xff]
    %v575 = vld [vmem:[#allocation8 + $0x470] sm:$0xff]
    %v576 = vld [vmem:[#allocation8 + $0x478] sm:$0xff]
    %577 = vmatprep.subr.mxu0 0.0
    %578 = vmatpush1.msra.mxu0 %v433
    %579 = vmatprep.subr.mxu0 0.0
    %580 = vmatpush1.msra.mxu0 %v434
    %581 = vmatprep.subr.mxu0 0.0
    %582 = vmatpush1.msra.mxu0 %v435
    %583 = vmatprep.subr.mxu0 0.0
    %584 = vmatpush1.msra.mxu0 %v436
    %585 = vmatprep.subr.mxu0 0.0
    %586 = vmatpush1.msra.mxu0 %v437
    %587 = vmatprep.subr.mxu0 0.0
    %588 = vmatpush1.msra.mxu0 %v438
    %589 = vmatprep.subr.mxu0 0.0
    %590 = vmatpush1.msra.mxu0 %v439
    %591 = vmatprep.subr.mxu0 0.0
    %592 = vmatpush1.msra.mxu0 %v440
    %593 = vmatprep.subr.mxu0 0.0
    %594 = vmatpush1.msra.mxu0 %v441
    %595 = vmatprep.subr.mxu0 0.0
    %596 = vmatpush1.msra.mxu0 %v442
    %597 = vmatprep.subr.mxu0 0.0
    %598 = vmatpush1.msra.mxu0 %v443
    %599 = vmatprep.subr.mxu0 0.0
    %600 = vmatpush1.msra.mxu0 %v444
    %601 = vmatprep.subr.mxu0 0.0
    %602 = vmatpush1.msra.mxu0 %v445
    %603 = vmatprep.subr.mxu0 0.0
    %604 = vmatpush1.msra.mxu0 %v446
    %605 = vmatprep.subr.mxu0 0.0
    %606 = vmatpush1.msra.mxu0 %v447
    %607 = vmatprep.subr.mxu0 0.0
    %608 = vmatpush1.msra.mxu0 %v448
    %609 = vmatprep.subr.mxu0 0.0
    %610 = vmatpush1.msra.mxu0 %v449
    %611 = vmatprep.subr.mxu0 0.0
    %612 = vmatpush1.msra.mxu0 %v450
    %613 = vmatprep.subr.mxu0 0.0
    %614 = vmatpush1.msra.mxu0 %v451
    %615 = vmatprep.subr.mxu0 0.0
    %616 = vmatpush1.msra.mxu0 %v452
    %617 = vmatprep.subr.mxu0 0.0
    %618 = vmatpush1.msra.mxu0 %v453
    %619 = vmatprep.subr.mxu0 0.0
    %620 = vmatpush1.msra.mxu0 %v454
    %621 = vmatprep.subr.mxu0 0.0
    %622 = vmatpush1.msra.mxu0 %v455
    %623 = vmatprep.subr.mxu0 0.0
    %624 = vmatpush1.msra.mxu0 %v456
    %625 = vmatprep.subr.mxu0 0.0
    %626 = vmatpush1.msra.mxu0 %v457
    %627 = vmatprep.subr.mxu0 0.0
    %628 = vmatpush1.msra.mxu0 %v458
    %629 = vmatprep.subr.mxu0 0.0
    %630 = vmatpush1.msra.mxu0 %v459
    %631 = vmatprep.subr.mxu0 0.0
    %632 = vmatpush1.msra.mxu0 %v460
    %633 = vmatprep.subr.mxu0 0.0
    %634 = vmatpush1.msra.mxu0 %v461
    %635 = vmatprep.subr.mxu0 0.0
    %636 = vmatpush1.msra.mxu0 %v462
    %637 = vmatprep.subr.mxu0 0.0
    %638 = vmatpush1.msra.mxu0 %v463
    %639 = vmatprep.subr.mxu0 0.0
    %640 = vmatpush1.msra.mxu0 %v464
    %641 = vmatprep.mubr.f32.mxu0 %v407
    %642 = vmatmul.mubr.f32.gmra.mrb[0].mxu0 %v404
    %v643 = vpop.f32.mrb[0].mxu0
    %v644 = vadd.f32 0.0, %v643
    %v645 = vpop.f32.mrb[0].mxu0
    %646 = vdwg.mxu0
    %647 = vmatprep.subr.mxu0 0.0
    %648 = vmatpush1.msra.mxu0 %v465
    %649 = vmatprep.subr.mxu0 0.0
    %650 = vmatpush1.msra.mxu0 %v466
    %651 = vmatprep.subr.mxu0 0.0
    %652 = vmatpush1.msra.mxu0 %v467
    %653 = vmatprep.subr.mxu0 0.0
    %654 = vmatpush1.msra.mxu0 %v468
    %655 = vmatprep.subr.mxu0 0.0
    %656 = vmatpush1.msra.mxu0 %v469
    %657 = vmatprep.subr.mxu0 0.0
    %658 = vmatpush1.msra.mxu0 %v470
    %659 = vmatprep.subr.mxu0 0.0
    %660 = vmatpush1.msra.mxu0 %v471
    %661 = vmatprep.subr.mxu0 0.0
    %662 = vmatpush1.msra.mxu0 %v472
    %663 = vmatprep.subr.mxu0 0.0
    %664 = vmatpush1.msra.mxu0 %v473
    %665 = vmatprep.subr.mxu0 0.0
    %666 = vmatpush1.msra.mxu0 %v474
    %667 = vmatprep.subr.mxu0 0.0
    %668 = vmatpush1.msra.mxu0 %v475
    %669 = vmatprep.subr.mxu0 0.0
    %670 = vmatpush1.msra.mxu0 %v476
    %671 = vmatprep.subr.mxu0 0.0
    %672 = vmatpush1.msra.mxu0 %v477
    %673 = vmatprep.subr.mxu0 0.0
    %674 = vmatpush1.msra.mxu0 %v478
    %675 = vmatprep.subr.mxu0 0.0
    %676 = vmatpush1.msra.mxu0 %v479
    %677 = vmatprep.subr.mxu0 0.0
    %678 = vmatpush1.msra.mxu0 %v480
    %679 = vmatprep.subr.mxu0 0.0
    %680 = vmatpush1.msra.mxu0 %v481
    %681 = vmatprep.subr.mxu0 0.0
    %682 = vmatpush1.msra.mxu0 %v482
    %683 = vmatprep.subr.mxu0 0.0
    %684 = vmatpush1.msra.mxu0 %v483
    %685 = vmatprep.subr.mxu0 0.0
    %686 = vmatpush1.msra.mxu0 %v484
    %687 = vmatprep.subr.mxu0 0.0
    %688 = vmatpush1.msra.mxu0 %v485
    %689 = vmatprep.subr.mxu0 0.0
    %690 = vmatpush1.msra.mxu0 %v486
    %691 = vmatprep.subr.mxu0 0.0
    %692 = vmatpush1.msra.mxu0 %v487
    %693 = vmatprep.subr.mxu0 0.0
    %694 = vmatpush1.msra.mxu0 %v488
    %695 = vmatprep.subr.mxu0 0.0
    %696 = vmatpush1.msra.mxu0 %v489
    %697 = vmatprep.subr.mxu0 0.0
    %698 = vmatpush1.msra.mxu0 %v490
    %699 = vmatprep.subr.mxu0 0.0
    %700 = vmatpush1.msra.mxu0 %v491
    %701 = vmatprep.subr.mxu0 0.0
    %702 = vmatpush1.msra.mxu0 %v492
    %703 = vmatprep.subr.mxu0 0.0
    %704 = vmatpush1.msra.mxu0 %v493
    %705 = vmatprep.subr.mxu0 0.0
    %706 = vmatpush1.msra.mxu0 %v494
    %707 = vmatprep.subr.mxu0 0.0
    %708 = vmatpush1.msra.mxu0 %v495
    %709 = vmatprep.subr.mxu0 0.0
    %710 = vmatpush1.msra.mxu0 %v496
    %711 = vmatprep.mubr.f32.mxu0 %v413
    %712 = vmatmul.mubr.f32.gmra.mrb[0].mxu0 %v410
    %v713 = vpop.f32.mrb[0].mxu0
    %v714 = vadd.f32 %v644, %v713
    %v715 = vpop.f32.mrb[0].mxu0
    %716 = vdwg.mxu0
    %717 = vmatprep.subr.mxu0 0.0
    %718 = vmatpush1.msra.mxu0 %v497
    %719 = vmatprep.subr.mxu0 0.0
    %720 = vmatpush1.msra.mxu0 %v498
    %721 = vmatprep.subr.mxu0 0.0
    %722 = vmatpush1.msra.mxu0 %v499
    %723 = vmatprep.subr.mxu0 0.0
    %724 = vmatpush1.msra.mxu0 %v500
    %725 = vmatprep.subr.mxu0 0.0
    %726 = vmatpush1.msra.mxu0 %v501
    %727 = vmatprep.subr.mxu0 0.0
    %728 = vmatpush1.msra.mxu0 %v502
    %729 = vmatprep.subr.mxu0 0.0
    %730 = vmatpush1.msra.mxu0 %v503
    %731 = vmatprep.subr.mxu0 0.0
    %732 = vmatpush1.msra.mxu0 %v504
    %733 = vmatprep.subr.mxu0 0.0
    %734 = vmatpush1.msra.mxu0 %v505
    %735 = vmatprep.subr.mxu0 0.0
    %736 = vmatpush1.msra.mxu0 %v506
    %737 = vmatprep.subr.mxu0 0.0
    %738 = vmatpush1.msra.mxu0 %v507
    %739 = vmatprep.subr.mxu0 0.0
    %740 = vmatpush1.msra.mxu0 %v508
    %741 = vmatprep.subr.mxu0 0.0
    %742 = vmatpush1.msra.mxu0 %v509
    %743 = vmatprep.subr.mxu0 0.0
    %744 = vmatpush1.msra.mxu0 %v510
    %745 = vmatprep.subr.mxu0 0.0
    %746 = vmatpush1.msra.mxu0 %v511
    %747 = vmatprep.subr.mxu0 0.0
    %748 = vmatpush1.msra.mxu0 %v512
    %749 = vmatprep.subr.mxu0 0.0
    %750 = vmatpush1.msra.mxu0 %v513
    %751 = vmatprep.subr.mxu0 0.0
    %752 = vmatpush1.msra.mxu0 %v514
    %753 = vmatprep.subr.mxu0 0.0
    %754 = vmatpush1.msra.mxu0 %v515
    %755 = vmatprep.subr.mxu0 0.0
    %756 = vmatpush1.msra.mxu0 %v516
    %757 = vmatprep.subr.mxu0 0.0
    %758 = vmatpush1.msra.mxu0 %v517
    %759 = vmatprep.subr.mxu0 0.0
    %760 = vmatpush1.msra.mxu0 %v518
    %761 = vmatprep.subr.mxu0 0.0
    %762 = vmatpush1.msra.mxu0 %v519
    %763 = vmatprep.subr.mxu0 0.0
    %764 = vmatpush1.msra.mxu0 %v520
    %765 = vmatprep.subr.mxu0 0.0
    %766 = vmatpush1.msra.mxu0 %v521
    %767 = vmatprep.subr.mxu0 0.0
    %768 = vmatpush1.msra.mxu0 %v522
    %769 = vmatprep.subr.mxu0 0.0
    %770 = vmatpush1.msra.mxu0 %v523
    %771 = vmatprep.subr.mxu0 0.0
    %772 = vmatpush1.msra.mxu0 %v524
    %773 = vmatprep.subr.mxu0 0.0
    %774 = vmatpush1.msra.mxu0 %v525
    %775 = vmatprep.subr.mxu0 0.0
    %776 = vmatpush1.msra.mxu0 %v526
    %777 = vmatprep.subr.mxu0 0.0
    %778 = vmatpush1.msra.mxu0 %v527
    %779 = vmatprep.subr.mxu0 0.0
    %780 = vmatpush1.msra.mxu0 %v528
    %781 = vmatprep.mubr.f32.mxu0 %v419
    %782 = vmatmul.mubr.f32.gmra.mrb[0].mxu0 %v416
    %v783 = vpop.f32.mrb[0].mxu0
    %v784 = vadd.f32 %v714, %v783
    %v785 = vpop.f32.mrb[0].mxu0
    %786 = vdwg.mxu0
    %787 = vmatprep.subr.mxu0 0.0
    %788 = vmatpush1.msra.mxu0 %v529
    %789 = vmatprep.subr.mxu0 0.0
    %790 = vmatpush1.msra.mxu0 %v530
    %791 = vmatprep.subr.mxu0 0.0
    %792 = vmatpush1.msra.mxu0 %v531
    %793 = vmatprep.subr.mxu0 0.0
    %794 = vmatpush1.msra.mxu0 %v532
    %795 = vmatprep.subr.mxu0 0.0
    %796 = vmatpush1.msra.mxu0 %v533
    %797 = vmatprep.subr.mxu0 0.0
    %798 = vmatpush1.msra.mxu0 %v534
    %799 = vmatprep.subr.mxu0 0.0
    %800 = vmatpush1.msra.mxu0 %v535
    %801 = vmatprep.subr.mxu0 0.0
    %802 = vmatpush1.msra.mxu0 %v536
    %803 = vmatprep.subr.mxu0 0.0
    %804 = vmatpush1.msra.mxu0 %v537
    %805 = vmatprep.subr.mxu0 0.0
    %806 = vmatpush1.msra.mxu0 %v538
    %807 = vmatprep.subr.mxu0 0.0
    %808 = vmatpush1.msra.mxu0 %v539
    %809 = vmatprep.subr.mxu0 0.0
    %810 = vmatpush1.msra.mxu0 %v540
    %811 = vmatprep.subr.mxu0 0.0
    %812 = vmatpush1.msra.mxu0 %v541
    %813 = vmatprep.subr.mxu0 0.0
    %814 = vmatpush1.msra.mxu0 %v542
    %815 = vmatprep.subr.mxu0 0.0
    %816 = vmatpush1.msra.mxu0 %v543
    %817 = vmatprep.subr.mxu0 0.0
    %818 = vmatpush1.msra.mxu0 %v544
    %819 = vmatprep.subr.mxu0 0.0
    %820 = vmatpush1.msra.mxu0 %v545
    %821 = vmatprep.subr.mxu0 0.0
    %822 = vmatpush1.msra.mxu0 %v546
    %823 = vmatprep.subr.mxu0 0.0
    %824 = vmatpush1.msra.mxu0 %v547
    %825 = vmatprep.subr.mxu0 0.0
    %826 = vmatpush1.msra.mxu0 %v548
    %827 = vmatprep.subr.mxu0 0.0
    %828 = vmatpush1.msra.mxu0 %v549
    %829 = vmatprep.subr.mxu0 0.0
    %830 = vmatpush1.msra.mxu0 %v550
    %831 = vmatprep.subr.mxu0 0.0
    %832 = vmatpush1.msra.mxu0 %v551
    %833 = vmatprep.subr.mxu0 0.0
    %834 = vmatpush1.msra.mxu0 %v552
    %835 = vmatprep.subr.mxu0 0.0
    %836 = vmatpush1.msra.mxu0 %v553
    %837 = vmatprep.subr.mxu0 0.0
    %838 = vmatpush1.msra.mxu0 %v554
    %839 = vmatprep.subr.mxu0 0.0
    %840 = vmatpush1.msra.mxu0 %v555
    %841 = vmatprep.subr.mxu0 0.0
    %842 = vmatpush1.msra.mxu0 %v556
    %843 = vmatprep.subr.mxu0 0.0
    %844 = vmatpush1.msra.mxu0 %v557
    %845 = vmatprep.subr.mxu0 0.0
    %846 = vmatpush1.msra.mxu0 %v558
    %847 = vmatprep.subr.mxu0 0.0
    %848 = vmatpush1.msra.mxu0 %v559
    %849 = vmatprep.subr.mxu0 0.0
    %850 = vmatpush1.msra.mxu0 %v560
    %851 = vmatprep.mubr.f32.mxu0 %v425
    %852 = vmatmul.mubr.f32.gmra.mrb[0].mxu0 %v422
    %v853 = vpop.f32.mrb[0].mxu0
    %v854 = vadd.f32 %v784, %v853
    %v855 = vpop.f32.mrb[0].mxu0
    %856 = vdwg.mxu0
    %857 = vmatprep.subr.mxu0 0.0
    %858 = vmatpush1.msra.mxu0 %v561
    %859 = vmatprep.subr.mxu0 0.0
    %860 = vmatpush1.msra.mxu0 %v562
    %861 = vmatprep.subr.mxu0 0.0
    %862 = vmatpush1.msra.mxu0 %v563
    %863 = vmatprep.subr.mxu0 0.0
    %864 = vmatpush1.msra.mxu0 %v564
    %865 = vmatprep.subr.mxu0 0.0
    %866 = vmatpush1.msra.mxu0 %v565
    %867 = vmatprep.subr.mxu0 0.0
    %868 = vmatpush1.msra.mxu0 %v566
    %869 = vmatprep.subr.mxu0 0.0
    %870 = vmatpush1.msra.mxu0 %v567
    %871 = vmatprep.subr.mxu0 0.0
    %872 = vmatpush1.msra.mxu0 %v568
    %873 = vmatprep.subr.mxu0 0.0
    %874 = vmatpush1.msra.mxu0 %v569
    %875 = vmatprep.subr.mxu0 0.0
    %876 = vmatpush1.msra.mxu0 %v570
    %877 = vmatprep.subr.mxu0 0.0
    %878 = vmatpush1.msra.mxu0 %v571
    %879 = vmatprep.subr.mxu0 0.0
    %880 = vmatpush1.msra.mxu0 %v572
    %881 = vmatprep.subr.mxu0 0.0
    %882 = vmatpush1.msra.mxu0 %v573
    %883 = vmatprep.subr.mxu0 0.0
    %884 = vmatpush1.msra.mxu0 %v574
    %885 = vmatprep.subr.mxu0 0.0
    %886 = vmatpush1.msra.mxu0 %v575
    %887 = vmatprep.subr.mxu0 0.0
    %888 = vmatpush1.msra.mxu0 %v576
    %889 = vmatprep.subr.mxu0 0.0
    %890 = vmatpush1.msra.mxu0 0.0
    %891 = vmatprep.subr.mxu0 0.0
    %892 = vmatpush1.msra.mxu0 0.0
    %893 = vmatprep.subr.mxu0 0.0
    %894 = vmatpush1.msra.mxu0 0.0
    %895 = vmatprep.subr.mxu0 0.0
    %896 = vmatpush1.msra.mxu0 0.0
    %897 = vmatprep.subr.mxu0 0.0
    %898 = vmatpush1.msra.mxu0 0.0
    %899 = vmatprep.subr.mxu0 0.0
    %900 = vmatpush1.msra.mxu0 0.0
    %901 = vmatprep.subr.mxu0 0.0
    %902 = vmatpush1.msra.mxu0 0.0
    %903 = vmatprep.subr.mxu0 0.0
    %904 = vmatpush1.msra.mxu0 0.0
    %905 = vmatprep.subr.mxu0 0.0
    %906 = vmatpush1.msra.mxu0 0.0
    %907 = vmatprep.subr.mxu0 0.0
    %908 = vmatpush1.msra.mxu0 0.0
    %909 = vmatprep.subr.mxu0 0.0
    %910 = vmatpush1.msra.mxu0 0.0
    %911 = vmatprep.subr.mxu0 0.0
    %912 = vmatpush1.msra.mxu0 0.0
    %913 = vmatprep.subr.mxu0 0.0
    %914 = vmatpush1.msra.mxu0 0.0
    %915 = vmatprep.subr.mxu0 0.0
    %916 = vmatpush1.msra.mxu0 0.0
    %917 = vmatprep.subr.mxu0 0.0
    %918 = vmatpush1.msra.mxu0 0.0
    %919 = vmatprep.subr.mxu0 0.0
    %920 = vmatpush1.msra.mxu0 0.0
    %921 = vmatprep.mubr.f32.mxu0 0.0
    %922 = vmatmul.mubr.f32.gmra.mrb[0].mxu0 %v432
    %v923 = vpop.f32.mrb[0].mxu0
    %v924 = vadd.f32 %v854, %v923
    %v925 = vpop.f32.mrb[0].mxu0
    %926 = vdwg.mxu0
    %vm927 = vcmask 517120
    %928 = vst.msk [vmem:[#allocation10] sm:$0x3] %vm927, %v924
    // Predicated region
    $region34: #{tpu_custom_call.1} parent=1 // pred_check
      _
    $region35: #{tpu_custom_call.1} parent=1 // pred_check_branch
      %930 = sbr.rel (0) target = $region37
    $region36: #{tpu_custom_call.1} parent=1 // pred_region
      %s932 = ssub.s32 32, 32
      %933 = vsyncadd [#allocation4], %s932
      %s935 = sshll.u32 [#allocation10], 4
      %s936 = int_to_ptr.vmem [resolvable:$true] %s935
      %938 = dma.vmem_to_hbm [thread:$0]  %s936, 32, %s4, [#allocation4]
    $region37: #{tpu_custom_call.1} parent=1 // pred_fallthru
      _
    // Predicated region
    $region38: #{tpu_custom_call.1} parent=1 // pred_check
      _
    $region39: #{tpu_custom_call.1} parent=1 // pred_check_branch
      %940 = sbr.rel (0) target = $region41
    $region40: #{tpu_custom_call.1} parent=1 // pred_region
      %941 = dma.done [#allocation4], 32
    $region41: #{tpu_custom_call.1} parent=1 // pred_fallthru
      _
    %942 = vsyncpa [#allocation3], 1
    %943 = vsyncpa [#allocation6], 1
    %944 = vsyncpa [#allocation9], 1
    %945 = vsyncpa [#allocation4], 1

</llo_original>
